<compile_context>
chip_gen: v7x
topology: tpu7x:2x2x1
jax: 0.10.0
libtpu: 0.0.40
codegen_flags: <defaults>
</compile_context>

<pallas_src>
import math

import jax
import jax.numpy as jnp
import numpy as np
from jax.experimental import pallas as pl
from jax.experimental.pallas import tpu as pltpu

# ---------------- module hyper-parameters (small, consistent with forward) ---
EMBED_DIM = 32
NUM_HEADS = 4
HEAD_DIM = EMBED_DIM // NUM_HEADS      # 8
WINDOW_SIZE = 2                        # full_window = 2*window_size + 1 = 5
BSZ = 2
SEQ = 8


# ----------------------------- fused Pallas kernel ----------------------------
def _fused_mhsa_kernel(x_ref, wqkv_ref, bqkv_ref, bias_ref, wo_ref, bo_ref, o_ref):
    """One grid step = whole module.
    x_ref:    (B*T, E)      input activations
    wqkv_ref: (E, 3E)       [Wq/scale | Wk | Wv] (already transposed from torch layout)
    bqkv_ref: (1, 3E)       [bq/scale | bk | bv]
    bias_ref: (T, T)        additive band mask (0 in-window, -1e9 outside)
    wo_ref:   (E, E)        output projection weight (transposed)
    bo_ref:   (1, E)        output projection bias
    o_ref:    (B*T, E)      result
    """
    x = x_ref[...]                                                  # (B*T, E)

    # fused Q/K/V projection (Q pre-scaled by 1/sqrt(head_dim))
    qkv = (jnp.dot(x, wqkv_ref[...], preferred_element_type=jnp.float32)
           + bqkv_ref[...])                                         # (B*T, 3E)
    q2d = qkv[:, :EMBED_DIM]
    k2d = qkv[:, EMBED_DIM:2 * EMBED_DIM]
    v2d = qkv[:, 2 * EMBED_DIM:]

    def split_heads(t2d):
        # (B*T, E) -> (B*H, T, D) via static slices + stack (no 4-D transpose)
        blocks = []
        for b in range(BSZ):
            rows = t2d[b * SEQ:(b + 1) * SEQ, :]                    # (T, E)
            for h in range(NUM_HEADS):
                blocks.append(rows[:, h * HEAD_DIM:(h + 1) * HEAD_DIM])
        return jnp.stack(blocks, axis=0)                            # (B*H, T, D)

    q = split_heads(q2d)
    k = split_heads(k2d)
    v = split_heads(v2d)

    # banded attention for all (batch, head) pairs in one batched contraction
    scores = jnp.einsum("bqd,bkd->bqk", q, k,
                        preferred_element_type=jnp.float32)         # (B*H, T, T)
    scores = scores + bias_ref[...]                                 # broadcast over b*h

    m = jnp.max(scores, axis=-1, keepdims=True)
    p = jnp.exp(scores - m)
    denom = jnp.sum(p, axis=-1, keepdims=True)
    p = p * pl.reciprocal(denom)                                    # exact 1/x

    attn = jnp.einsum("bqk,bkd->bqd", p, v,
                      preferred_element_type=jnp.float32)           # (B*H, T, D)

    # merge heads back to (B*T, E)
    rows = []
    for b in range(BSZ):
        rows.append(jnp.concatenate(
            [attn[b * NUM_HEADS + h] for h in range(NUM_HEADS)], axis=-1))  # (T, E)
    attn2d = jnp.concatenate(rows, axis=0)                          # (B*T, E)

    # output projection
    o_ref[...] = (jnp.dot(attn2d, wo_ref[...],
                          preferred_element_type=jnp.float32) + bo_ref[...])


def _band_bias(seq_len):
    """Additive mask: 0 where |i-j| <= 2*window_size (matches torch start/end loop),
    -1e9 elsewhere (finite to avoid NaNs if a row were ever fully masked)."""
    idx = np.arange(seq_len)
    band = 2 * WINDOW_SIZE
    in_window = np.abs(idx[:, None] - idx[None, :]) <= band
    return jnp.asarray(np.where(in_window, 0.0, -1e9), dtype=jnp.float32)


def multihead_sliding_window_self_attention(hidden_states, params):
    bsz, tgt_len, embed_dim = hidden_states.shape
    assert embed_dim == EMBED_DIM

    x2d = hidden_states.reshape(bsz * tgt_len, embed_dim).astype(jnp.float32)

    # fold 1/sqrt(head_dim) into Q projection; fuse Q/K/V into one (E, 3E) matmul
    scale = math.sqrt(HEAD_DIM)
    w_qkv_t = jnp.concatenate(
        [params["q_w"].T / scale, params["k_w"].T, params["v_w"].T], axis=1)
    b_qkv = jnp.concatenate(
        [params["q_b"] / scale, params["k_b"], params["v_b"]]).reshape(1, 3 * embed_dim)
    w_o_t = params["o_w"].T
    b_o = params["o_b"].reshape(1, embed_dim)
    bias = _band_bias(tgt_len)

    M = bsz * tgt_len
    out2d = pl.pallas_call(
        _fused_mhsa_kernel,
        out_shape=jax.ShapeDtypeStruct((M, embed_dim), jnp.float32),
        grid=(1,),
        in_specs=[
            pl.BlockSpec((M, embed_dim), lambda i: (0, 0)),
            pl.BlockSpec((embed_dim, 3 * embed_dim), lambda i: (0, 0)),
            pl.BlockSpec((1, 3 * embed_dim), lambda i: (0, 0)),
            pl.BlockSpec((tgt_len, tgt_len), lambda i: (0, 0)),
            pl.BlockSpec((embed_dim, embed_dim), lambda i: (0, 0)),
            pl.BlockSpec((1, embed_dim), lambda i: (0, 0)),
        ],
        out_specs=pl.BlockSpec((M, embed_dim), lambda i: (0, 0)),
        compiler_params=pltpu.CompilerParams(
            dimension_semantics=("arbitrary",)),
    )(x2d, w_qkv_t, b_qkv, bias, w_o_t, b_o)

    return out2d.reshape(bsz, tgt_len, embed_dim)


# ----------------------------- parameter init ---------------------------------
def init_params(key):
    """Deterministic init mimicking torch.nn.Linear default U(-1/sqrt(in), 1/sqrt(in))."""
    bound = 1.0 / math.sqrt(EMBED_DIM)
    keys = jax.random.split(key, 8)
    names = ["q", "k", "v", "o"]
    params = {}
    for idx, n in enumerate(names):
        params[f"{n}_w"] = jax.random.uniform(
            keys[2 * idx], (EMBED_DIM, EMBED_DIM), jnp.float32, -bound, bound
        )  # torch layout: (out_features, in_features)
        params[f"{n}_b"] = jax.random.uniform(
            keys[2 * idx + 1], (EMBED_DIM,), jnp.float32, -bound, bound
        )
    return params


# ----------------------------- plain-JAX reference ----------------------------
def reference_forward(hidden_states, params):
    """Mirrors the PyTorch per-position loop exactly (for correctness check)."""
    bsz, tgt_len, embed_dim = hidden_states.shape
    x = hidden_states.astype(jnp.float32)

    def lin(x_, w, b):
        return x_ @ w.T + b

    q = lin(x, params["q_w"], params["q_b"])
    k = lin(x, params["k_w"], params["k_b"])
    v = lin(x, params["v_w"], params["v_b"])

    def split(t):
        return t.reshape(bsz, tgt_len, NUM_HEADS, HEAD_DIM).transpose(0, 2, 1, 3)

    q, k, v = split(q), split(k), split(v)
    src_len = k.shape[2]
    scale = math.sqrt(HEAD_DIM)
    full_window = 2 * WINDOW_SIZE + 1

    rows = []
    for i in range(tgt_len):
        start = max(0, i - full_window + 1)
        end = min(src_len, i + full_window)
        q_slice = q[:, :, i:i + 1, :]                  # (b, h, 1, d)
        k_slice = k[:, :, start:end, :]
        v_slice = v[:, :, start:end, :]
        score = jnp.einsum("bhqd,bhkd->bhqk", q_slice, k_slice) / scale
        score = jax.nn.softmax(score, axis=-1)
        rows.append(jnp.einsum("bhqk,bhkd->bhqd", score, v_slice)[:, :, 0, :])
    attn = jnp.stack(rows, axis=2)                     # (b, h, t, d)
    attn = attn.transpose(0, 2, 1, 3).reshape(bsz, tgt_len, embed_dim)
    return attn @ params["o_w"].T + params["o_b"]


# ----------------------------- main -------------------------------------------
if __name__ == "__main__":
    key = jax.random.PRNGKey(0)
    k_param, k_input = jax.random.split(key)
    params = init_params(k_param)
    hidden_states = jax.random.normal(k_input, (BSZ, SEQ, EMBED_DIM), jnp.float32)

    out = multihead_sliding_window_self_attention(hidden_states, params)
    out = jax.block_until_ready(out)

    ref = reference_forward(hidden_states, params)
    np.testing.assert_allclose(np.asarray(out), np.asarray(ref), atol=2e-5, rtol=2e-5)

    print("KERNEL_OK")
</pallas_src>

<mosaic_0001>
module attributes {stable_mosaic.version = 11 : i64} {
  func.func @_fused_mhsa_kernel(%arg0: i32, %arg1: memref<16x32xf32, #tpu.memory_space<vmem>>, %arg2: memref<32x96xf32, #tpu.memory_space<vmem>>, %arg3: memref<1x96xf32, #tpu.memory_space<vmem>>, %arg4: memref<8x8xf32, #tpu.memory_space<vmem>>, %arg5: memref<32x32xf32, #tpu.memory_space<vmem>>, %arg6: memref<1x32xf32, #tpu.memory_space<vmem>>, %arg7: memref<16x32xf32, #tpu.memory_space<vmem>>) attributes {dimension_semantics = [#tpu.dimension_semantics<arbitrary>], iteration_bounds = array<i64: 1>, scalar_prefetch = 0 : i64, scratch_operands = 0 : i64, tpu.core_type = #tpu.core_type<tc>, window_params = [{pipeline_mode = #tpu.pipeline_mode<synchronous>, transform_indices = @transform_0, window_bounds = array<i64: 16, 32>}, {pipeline_mode = #tpu.pipeline_mode<synchronous>, transform_indices = @transform_1, window_bounds = array<i64: 32, 96>}, {pipeline_mode = #tpu.pipeline_mode<synchronous>, transform_indices = @transform_2, window_bounds = array<i64: 1, 96>}, {pipeline_mode = #tpu.pipeline_mode<synchronous>, transform_indices = @transform_3, window_bounds = array<i64: 8, 8>}, {pipeline_mode = #tpu.pipeline_mode<synchronous>, transform_indices = @transform_4, window_bounds = array<i64: 32, 32>}, {pipeline_mode = #tpu.pipeline_mode<synchronous>, transform_indices = @transform_5, window_bounds = array<i64: 1, 32>}, {pipeline_mode = #tpu.pipeline_mode<synchronous>, transform_indices = @transform_6, window_bounds = array<i64: 16, 32>}]} {
    %c0 = arith.constant 0 : index
    %c0_0 = arith.constant 0 : index
    %0 = vector.load %arg1[%c0, %c0_0] : memref<16x32xf32, #tpu.memory_space<vmem>>, vector<16x32xf32>
    %c0_1 = arith.constant 0 : index
    %c0_2 = arith.constant 0 : index
    %1 = vector.load %arg2[%c0_1, %c0_2] : memref<32x96xf32, #tpu.memory_space<vmem>>, vector<32x96xf32>
    %cst = arith.constant dense<0.000000e+00> : vector<16x96xf32>
    %2 = tpu.matmul %0, %1, %cst {dimension_numbers = #tpu.dot_dimension_numbers<[1], [0], [0], [1], [0, 0, 1, 1], [], []>} : vector<16x32xf32>, vector<32x96xf32>, vector<16x96xf32> -> vector<16x96xf32>
    %c0_3 = arith.constant 0 : index
    %c0_4 = arith.constant 0 : index
    %3 = vector.load %arg3[%c0_3, %c0_4] : memref<1x96xf32, #tpu.memory_space<vmem>>, vector<1x96xf32>
    %4 = vector.broadcast %3 : vector<1x96xf32> to vector<16x96xf32>
    %5 = arith.addf %2, %4 : vector<16x96xf32>
    %6 = vector.extract_strided_slice %5 {offsets = [0, 0], sizes = [16, 32], strides = [1, 1]} : vector<16x96xf32> to vector<16x32xf32>
    %7 = vector.extract_strided_slice %5 {offsets = [0, 32], sizes = [16, 32], strides = [1, 1]} : vector<16x96xf32> to vector<16x32xf32>
    %8 = vector.extract_strided_slice %5 {offsets = [0, 64], sizes = [16, 32], strides = [1, 1]} : vector<16x96xf32> to vector<16x32xf32>
    %9 = vector.extract_strided_slice %6 {offsets = [0, 0], sizes = [8, 32], strides = [1, 1]} : vector<16x32xf32> to vector<8x32xf32>
    %10 = vector.extract_strided_slice %9 {offsets = [0, 0], sizes = [8, 8], strides = [1, 1]} : vector<8x32xf32> to vector<8x8xf32>
    %11 = vector.extract_strided_slice %9 {offsets = [0, 8], sizes = [8, 8], strides = [1, 1]} : vector<8x32xf32> to vector<8x8xf32>
    %12 = vector.extract_strided_slice %9 {offsets = [0, 16], sizes = [8, 8], strides = [1, 1]} : vector<8x32xf32> to vector<8x8xf32>
    %13 = vector.extract_strided_slice %9 {offsets = [0, 24], sizes = [8, 8], strides = [1, 1]} : vector<8x32xf32> to vector<8x8xf32>
    %14 = vector.extract_strided_slice %6 {offsets = [8, 0], sizes = [8, 32], strides = [1, 1]} : vector<16x32xf32> to vector<8x32xf32>
    %15 = vector.extract_strided_slice %14 {offsets = [0, 0], sizes = [8, 8], strides = [1, 1]} : vector<8x32xf32> to vector<8x8xf32>
    %16 = vector.extract_strided_slice %14 {offsets = [0, 8], sizes = [8, 8], strides = [1, 1]} : vector<8x32xf32> to vector<8x8xf32>
    %17 = vector.extract_strided_slice %14 {offsets = [0, 16], sizes = [8, 8], strides = [1, 1]} : vector<8x32xf32> to vector<8x8xf32>
    %18 = vector.extract_strided_slice %14 {offsets = [0, 24], sizes = [8, 8], strides = [1, 1]} : vector<8x32xf32> to vector<8x8xf32>
    %19 = vector.shape_cast %10 : vector<8x8xf32> to vector<1x8x8xf32>
    %20 = vector.shape_cast %11 : vector<8x8xf32> to vector<1x8x8xf32>
    %21 = vector.shape_cast %12 : vector<8x8xf32> to vector<1x8x8xf32>
    %22 = vector.shape_cast %13 : vector<8x8xf32> to vector<1x8x8xf32>
    %23 = vector.shape_cast %15 : vector<8x8xf32> to vector<1x8x8xf32>
    %24 = vector.shape_cast %16 : vector<8x8xf32> to vector<1x8x8xf32>
    %25 = vector.shape_cast %17 : vector<8x8xf32> to vector<1x8x8xf32>
    %26 = vector.shape_cast %18 : vector<8x8xf32> to vector<1x8x8xf32>
    %27 = tpu.concatenate %19, %20, %21, %22, %23, %24, %25, %26 in 0 : vector<1x8x8xf32>, vector<1x8x8xf32>, vector<1x8x8xf32>, vector<1x8x8xf32>, vector<1x8x8xf32>, vector<1x8x8xf32>, vector<1x8x8xf32>, vector<1x8x8xf32> -> vector<8x8x8xf32>
    %28 = vector.extract_strided_slice %7 {offsets = [0, 0], sizes = [8, 32], strides = [1, 1]} : vector<16x32xf32> to vector<8x32xf32>
    %29 = vector.extract_strided_slice %28 {offsets = [0, 0], sizes = [8, 8], strides = [1, 1]} : vector<8x32xf32> to vector<8x8xf32>
    %30 = vector.extract_strided_slice %28 {offsets = [0, 8], sizes = [8, 8], strides = [1, 1]} : vector<8x32xf32> to vector<8x8xf32>
    %31 = vector.extract_strided_slice %28 {offsets = [0, 16], sizes = [8, 8], strides = [1, 1]} : vector<8x32xf32> to vector<8x8xf32>
    %32 = vector.extract_strided_slice %28 {offsets = [0, 24], sizes = [8, 8], strides = [1, 1]} : vector<8x32xf32> to vector<8x8xf32>
    %33 = vector.extract_strided_slice %7 {offsets = [8, 0], sizes = [8, 32], strides = [1, 1]} : vector<16x32xf32> to vector<8x32xf32>
    %34 = vector.extract_strided_slice %33 {offsets = [0, 0], sizes = [8, 8], strides = [1, 1]} : vector<8x32xf32> to vector<8x8xf32>
    %35 = vector.extract_strided_slice %33 {offsets = [0, 8], sizes = [8, 8], strides = [1, 1]} : vector<8x32xf32> to vector<8x8xf32>
    %36 = vector.extract_strided_slice %33 {offsets = [0, 16], sizes = [8, 8], strides = [1, 1]} : vector<8x32xf32> to vector<8x8xf32>
    %37 = vector.extract_strided_slice %33 {offsets = [0, 24], sizes = [8, 8], strides = [1, 1]} : vector<8x32xf32> to vector<8x8xf32>
    %38 = vector.shape_cast %29 : vector<8x8xf32> to vector<1x8x8xf32>
    %39 = vector.shape_cast %30 : vector<8x8xf32> to vector<1x8x8xf32>
    %40 = vector.shape_cast %31 : vector<8x8xf32> to vector<1x8x8xf32>
    %41 = vector.shape_cast %32 : vector<8x8xf32> to vector<1x8x8xf32>
    %42 = vector.shape_cast %34 : vector<8x8xf32> to vector<1x8x8xf32>
    %43 = vector.shape_cast %35 : vector<8x8xf32> to vector<1x8x8xf32>
    %44 = vector.shape_cast %36 : vector<8x8xf32> to vector<1x8x8xf32>
    %45 = vector.shape_cast %37 : vector<8x8xf32> to vector<1x8x8xf32>
    %46 = tpu.concatenate %38, %39, %40, %41, %42, %43, %44, %45 in 0 : vector<1x8x8xf32>, vector<1x8x8xf32>, vector<1x8x8xf32>, vector<1x8x8xf32>, vector<1x8x8xf32>, vector<1x8x8xf32>, vector<1x8x8xf32>, vector<1x8x8xf32> -> vector<8x8x8xf32>
    %47 = vector.extract_strided_slice %8 {offsets = [0, 0], sizes = [8, 32], strides = [1, 1]} : vector<16x32xf32> to vector<8x32xf32>
    %48 = vector.extract_strided_slice %47 {offsets = [0, 0], sizes = [8, 8], strides = [1, 1]} : vector<8x32xf32> to vector<8x8xf32>
    %49 = vector.extract_strided_slice %47 {offsets = [0, 8], sizes = [8, 8], strides = [1, 1]} : vector<8x32xf32> to vector<8x8xf32>
    %50 = vector.extract_strided_slice %47 {offsets = [0, 16], sizes = [8, 8], strides = [1, 1]} : vector<8x32xf32> to vector<8x8xf32>
    %51 = vector.extract_strided_slice %47 {offsets = [0, 24], sizes = [8, 8], strides = [1, 1]} : vector<8x32xf32> to vector<8x8xf32>
    %52 = vector.extract_strided_slice %8 {offsets = [8, 0], sizes = [8, 32], strides = [1, 1]} : vector<16x32xf32> to vector<8x32xf32>
    %53 = vector.extract_strided_slice %52 {offsets = [0, 0], sizes = [8, 8], strides = [1, 1]} : vector<8x32xf32> to vector<8x8xf32>
    %54 = vector.extract_strided_slice %52 {offsets = [0, 8], sizes = [8, 8], strides = [1, 1]} : vector<8x32xf32> to vector<8x8xf32>
    %55 = vector.extract_strided_slice %52 {offsets = [0, 16], sizes = [8, 8], strides = [1, 1]} : vector<8x32xf32> to vector<8x8xf32>
    %56 = vector.extract_strided_slice %52 {offsets = [0, 24], sizes = [8, 8], strides = [1, 1]} : vector<8x32xf32> to vector<8x8xf32>
    %57 = vector.shape_cast %48 : vector<8x8xf32> to vector<1x8x8xf32>
    %58 = vector.shape_cast %49 : vector<8x8xf32> to vector<1x8x8xf32>
    %59 = vector.shape_cast %50 : vector<8x8xf32> to vector<1x8x8xf32>
    %60 = vector.shape_cast %51 : vector<8x8xf32> to vector<1x8x8xf32>
    %61 = vector.shape_cast %53 : vector<8x8xf32> to vector<1x8x8xf32>
    %62 = vector.shape_cast %54 : vector<8x8xf32> to vector<1x8x8xf32>
    %63 = vector.shape_cast %55 : vector<8x8xf32> to vector<1x8x8xf32>
    %64 = vector.shape_cast %56 : vector<8x8xf32> to vector<1x8x8xf32>
    %65 = tpu.concatenate %57, %58, %59, %60, %61, %62, %63, %64 in 0 : vector<1x8x8xf32>, vector<1x8x8xf32>, vector<1x8x8xf32>, vector<1x8x8xf32>, vector<1x8x8xf32>, vector<1x8x8xf32>, vector<1x8x8xf32>, vector<1x8x8xf32> -> vector<8x8x8xf32>
    "tpu.trace_start"() <{level = 10 : i32, message = "bqd,bkd->bqk"}> : () -> ()
    %cst_5 = arith.constant dense<0.000000e+00> : vector<8x8x8xf32>
    %66 = tpu.matmul %27, %46, %cst_5 {dimension_numbers = #tpu.dot_dimension_numbers<[2], [2], [1], [1], [0, 0, 0, 1, 1, 1], [0], [0]>} : vector<8x8x8xf32>, vector<8x8x8xf32>, vector<8x8x8xf32> -> vector<8x8x8xf32>
    "tpu.trace_stop"() : () -> ()
    %c0_6 = arith.constant 0 : index
    %c0_7 = arith.constant 0 : index
    %67 = vector.load %arg4[%c0_6, %c0_7] : memref<8x8xf32, #tpu.memory_space<vmem>>, vector<8x8xf32>
    %68 = vector.shape_cast %67 : vector<8x8xf32> to vector<1x8x8xf32>
    %69 = vector.broadcast %68 : vector<1x8x8xf32> to vector<8x8x8xf32>
    %70 = arith.addf %66, %69 : vector<8x8x8xf32>
    %cst_8 = arith.constant dense<0xFF800000> : vector<8x8xf32>
    %71 = vector.multi_reduction <maximumf>, %70, %cst_8 [2] : vector<8x8x8xf32> to vector<8x8xf32>
    %72 = vector.shape_cast %71 : vector<8x8xf32> to vector<8x8x1xf32>
    %73 = vector.broadcast %72 : vector<8x8x1xf32> to vector<8x8x8xf32>
    %74 = arith.subf %70, %73 : vector<8x8x8xf32>
    %75 = math.exp %74 : vector<8x8x8xf32>
    %cst_9 = arith.constant dense<0.000000e+00> : vector<8x8xf32>
    %76 = vector.multi_reduction <add>, %75, %cst_9 [2] : vector<8x8x8xf32> to vector<8x8xf32>
    %77 = vector.shape_cast %76 : vector<8x8xf32> to vector<8x8x1xf32>
    %78 = tpu.reciprocal %77 : vector<8x8x1xf32> -> vector<8x8x1xf32>
    %79 = vector.broadcast %78 : vector<8x8x1xf32> to vector<8x8x8xf32>
    %80 = arith.mulf %75, %79 : vector<8x8x8xf32>
    "tpu.trace_start"() <{level = 10 : i32, message = "bqk,bkd->bqd"}> : () -> ()
    %cst_10 = arith.constant dense<0.000000e+00> : vector<8x8x8xf32>
    %81 = tpu.matmul %80, %65, %cst_10 {dimension_numbers = #tpu.dot_dimension_numbers<[2], [1], [1], [2], [0, 0, 0, 1, 1, 2], [0], [0]>} : vector<8x8x8xf32>, vector<8x8x8xf32>, vector<8x8x8xf32> -> vector<8x8x8xf32>
    "tpu.trace_stop"() : () -> ()
    %82 = vector.extract_strided_slice %81 {offsets = [0, 0, 0], sizes = [1, 8, 8], strides = [1, 1, 1]} : vector<8x8x8xf32> to vector<1x8x8xf32>
    %83 = vector.shape_cast %82 : vector<1x8x8xf32> to vector<8x8xf32>
    %84 = vector.extract_strided_slice %81 {offsets = [1, 0, 0], sizes = [1, 8, 8], strides = [1, 1, 1]} : vector<8x8x8xf32> to vector<1x8x8xf32>
    %85 = vector.shape_cast %84 : vector<1x8x8xf32> to vector<8x8xf32>
    %86 = vector.extract_strided_slice %81 {offsets = [2, 0, 0], sizes = [1, 8, 8], strides = [1, 1, 1]} : vector<8x8x8xf32> to vector<1x8x8xf32>
    %87 = vector.shape_cast %86 : vector<1x8x8xf32> to vector<8x8xf32>
    %88 = vector.extract_strided_slice %81 {offsets = [3, 0, 0], sizes = [1, 8, 8], strides = [1, 1, 1]} : vector<8x8x8xf32> to vector<1x8x8xf32>
    %89 = vector.shape_cast %88 : vector<1x8x8xf32> to vector<8x8xf32>
    %90 = tpu.concatenate %83, %85, %87, %89 in 1 : vector<8x8xf32>, vector<8x8xf32>, vector<8x8xf32>, vector<8x8xf32> -> vector<8x32xf32>
    %91 = vector.extract_strided_slice %81 {offsets = [4, 0, 0], sizes = [1, 8, 8], strides = [1, 1, 1]} : vector<8x8x8xf32> to vector<1x8x8xf32>
    %92 = vector.shape_cast %91 : vector<1x8x8xf32> to vector<8x8xf32>
    %93 = vector.extract_strided_slice %81 {offsets = [5, 0, 0], sizes = [1, 8, 8], strides = [1, 1, 1]} : vector<8x8x8xf32> to vector<1x8x8xf32>
    %94 = vector.shape_cast %93 : vector<1x8x8xf32> to vector<8x8xf32>
    %95 = vector.extract_strided_slice %81 {offsets = [6, 0, 0], sizes = [1, 8, 8], strides = [1, 1, 1]} : vector<8x8x8xf32> to vector<1x8x8xf32>
    %96 = vector.shape_cast %95 : vector<1x8x8xf32> to vector<8x8xf32>
    %97 = vector.extract_strided_slice %81 {offsets = [7, 0, 0], sizes = [1, 8, 8], strides = [1, 1, 1]} : vector<8x8x8xf32> to vector<1x8x8xf32>
    %98 = vector.shape_cast %97 : vector<1x8x8xf32> to vector<8x8xf32>
    %99 = tpu.concatenate %92, %94, %96, %98 in 1 : vector<8x8xf32>, vector<8x8xf32>, vector<8x8xf32>, vector<8x8xf32> -> vector<8x32xf32>
    %100 = tpu.concatenate %90, %99 in 0 : vector<8x32xf32>, vector<8x32xf32> -> vector<16x32xf32>
    %c0_11 = arith.constant 0 : index
    %c0_12 = arith.constant 0 : index
    %101 = vector.load %arg5[%c0_11, %c0_12] : memref<32x32xf32, #tpu.memory_space<vmem>>, vector<32x32xf32>
    %cst_13 = arith.constant dense<0.000000e+00> : vector<16x32xf32>
    %102 = tpu.matmul %100, %101, %cst_13 {dimension_numbers = #tpu.dot_dimension_numbers<[1], [0], [0], [1], [0, 0, 1, 1], [], []>} : vector<16x32xf32>, vector<32x32xf32>, vector<16x32xf32> -> vector<16x32xf32>
    %c0_14 = arith.constant 0 : index
    %c0_15 = arith.constant 0 : index
    %103 = vector.load %arg6[%c0_14, %c0_15] : memref<1x32xf32, #tpu.memory_space<vmem>>, vector<1x32xf32>
    %104 = vector.broadcast %103 : vector<1x32xf32> to vector<16x32xf32>
    %105 = arith.addf %102, %104 : vector<16x32xf32>
    %c0_16 = arith.constant 0 : index
    %c0_17 = arith.constant 0 : index
    %106 = vector.load %arg7[%c0_16, %c0_17] : memref<16x32xf32, #tpu.memory_space<vmem>>, vector<16x32xf32>
    tpu.vector_store %arg7[%c0_16, %c0_17], %105 {strides = array<i32>} : memref<16x32xf32, #tpu.memory_space<vmem>>, vector<16x32xf32>,
    return
  }
  func.func @transform_0(%arg0: i32) -> (i32, i32) {
    %c0_i32 = arith.constant 0 : i32
    %c0_i32_0 = arith.constant 0 : i32
    %c0_i32_1 = arith.constant 0 : i32
    return %c0_i32, %c0_i32_0 : i32, i32
  }
  func.func @transform_1(%arg0: i32) -> (i32, i32) {
    %c0_i32 = arith.constant 0 : i32
    %c0_i32_0 = arith.constant 0 : i32
    %c0_i32_1 = arith.constant 0 : i32
    return %c0_i32, %c0_i32_0 : i32, i32
  }
  func.func @transform_2(%arg0: i32) -> (i32, i32) {
    %c0_i32 = arith.constant 0 : i32
    %c0_i32_0 = arith.constant 0 : i32
    %c0_i32_1 = arith.constant 0 : i32
    return %c0_i32, %c0_i32_0 : i32, i32
  }
  func.func @transform_3(%arg0: i32) -> (i32, i32) {
    %c0_i32 = arith.constant 0 : i32
    %c0_i32_0 = arith.constant 0 : i32
    %c0_i32_1 = arith.constant 0 : i32
    return %c0_i32, %c0_i32_0 : i32, i32
  }
  func.func @transform_4(%arg0: i32) -> (i32, i32) {
    %c0_i32 = arith.constant 0 : i32
    %c0_i32_0 = arith.constant 0 : i32
    %c0_i32_1 = arith.constant 0 : i32
    return %c0_i32, %c0_i32_0 : i32, i32
  }
  func.func @transform_5(%arg0: i32) -> (i32, i32) {
    %c0_i32 = arith.constant 0 : i32
    %c0_i32_0 = arith.constant 0 : i32
    %c0_i32_1 = arith.constant 0 : i32
    return %c0_i32, %c0_i32_0 : i32, i32
  }
  func.func @transform_6(%arg0: i32) -> (i32, i32) {
    %c0_i32 = arith.constant 0 : i32
    %c0_i32_0 = arith.constant 0 : i32
    %c0_i32_1 = arith.constant 0 : i32
    return %c0_i32, %c0_i32_0 : i32, i32
  }
}

</mosaic_0001>

<llo_original>
// kernel: tpu_custom_call.1
$region0: #{tpu_custom_call.1}
  #allocation0 [shape = 'u32[]', space=smem, size = 0x4, offset = 0x4, fixed_abs, tag = 'smem constant byte address 0x4 - core index']
  #allocation1 [shape = 'u32[144,128]{1,0:T(1,128)}', space=vmem, size = 0x12000, scoped, tag = 'internal scratch']
  %s0 = inlined_call_operand.hbm [shape: f32[16,32], index: 0, kind: input, shape index: {}]
  %s1 = inlined_call_operand.hbm [shape: f32[32,96], index: 1, kind: input, shape index: {}]
  %s2 = inlined_call_operand.vmem [shape: f32[1,96], index: 2, kind: input, shape index: {}]
  %s3 = inlined_call_operand.vmem [shape: f32[8,8], index: 3, kind: input, shape index: {}]
  %s4 = inlined_call_operand.hbm [shape: f32[32,32], index: 4, kind: input, shape index: {}]
  %s5 = inlined_call_operand.vmem [shape: f32[1,32], index: 5, kind: input, shape index: {}]
  %s6 = inlined_call_operand.hbm [shape: f32[16,32], index: 6, kind: output, shape index: {}]
  %s7 = sld [smem:[#allocation0]]
  $region46: #{tpu_custom_call.1} parent=0
    _
  %s9 = ssub.s32 1, %s7
  %s10 = scalar_select 0, %s9, %s7
  $region1: #{tpu_custom_call.1} parent=0
    #allocation2 [shape = 'u8[8192]{0}', space=vmem, size = 0x2000, scoped, tag = 'input window, operand 0, single buffered']
    #allocation3 [shape = 's32[1]{0}', space=sflag, size = 0x4, scoped, tag = 'scoped memory for tpu_custom_call.1']
    #allocation4 [shape = 's32[1]{0}', space=sflag, size = 0x4, scoped, tag = 'scoped memory for tpu_custom_call.1']
    #allocation5 [shape = 'u8[16384]{0}', space=vmem, size = 0x4000, scoped, tag = 'input window, operand 1, single buffered']
    #allocation6 [shape = 's32[1]{0}', space=sflag, size = 0x4, scoped, tag = 'scoped memory for tpu_custom_call.1']
    #allocation7 [shape = 'u8[16384]{0}', space=vmem, size = 0x4000, scoped, tag = 'input window, operand 4, single buffered']
    #allocation8 [shape = 'u8[8192]{0}', space=vmem, size = 0x2000, scoped, tag = 'output window, operand 0, single buffered']
    %11 = vsyncpa [#allocation3], 0
    %12 = vsyncpa [#allocation6], 0
    %13 = vsyncpa [#allocation4], 0
    // Predicated region
    $region2: #{tpu_custom_call.1} parent=1 // pred_check
      _
    $region3: #{tpu_custom_call.1} parent=1 // pred_check_branch
      %15 = sbr.rel (0) target = $region5
    $region4: #{tpu_custom_call.1} parent=1 // pred_region
      %s17 = ssub.s32 256, 256
      %18 = vsyncadd [#allocation3], %s17
      %s19 = sshll.u32 [#allocation2], 4
      %s20 = int_to_ptr.vmem [resolvable:$true] %s19
      %25 = dma.hbm_to_vmem [thread:$0]  %s0, 256, %s20, [#allocation3], 128, 128, 8
    $region5: #{tpu_custom_call.1} parent=1 // pred_fallthru
      _
    // Predicated region
    $region6: #{tpu_custom_call.1} parent=1 // pred_check
      _
    $region7: #{tpu_custom_call.1} parent=1 // pred_check_branch
      %27 = sbr.rel (0) target = $region9
    $region8: #{tpu_custom_call.1} parent=1 // pred_region
      %s29 = ssub.s32 512, 512
      %30 = vsyncadd [#allocation6], %s29
      %s31 = sshll.u32 [#allocation5], 4
      %s32 = int_to_ptr.vmem [resolvable:$true] %s31
      %37 = dma.hbm_to_vmem [thread:$0]  %s1, 512, %s32, [#allocation6], 128, 128, 8
    $region9: #{tpu_custom_call.1} parent=1 // pred_fallthru
      _
    // Predicated region
    $region10: #{tpu_custom_call.1} parent=1 // pred_check
      _
    $region11: #{tpu_custom_call.1} parent=1 // pred_check_branch
      %39 = sbr.rel (0) target = $region13
    $region12: #{tpu_custom_call.1} parent=1 // pred_region
      _
    $region13: #{tpu_custom_call.1} parent=1 // pred_fallthru
      _
    // Predicated region
    $region14: #{tpu_custom_call.1} parent=1 // pred_check
      _
    $region15: #{tpu_custom_call.1} parent=1 // pred_check_branch
      %41 = sbr.rel (0) target = $region17
    $region16: #{tpu_custom_call.1} parent=1 // pred_region
      _
    $region17: #{tpu_custom_call.1} parent=1 // pred_fallthru
      _
    // Predicated region
    $region18: #{tpu_custom_call.1} parent=1 // pred_check
      _
    $region19: #{tpu_custom_call.1} parent=1 // pred_check_branch
      %43 = sbr.rel (0) target = $region21
    $region20: #{tpu_custom_call.1} parent=1 // pred_region
      %s45 = ssub.s32 512, 512
      %46 = vsyncadd [#allocation6], %s45
      %s47 = sshll.u32 [#allocation7], 4
      %s48 = int_to_ptr.vmem [resolvable:$true] %s47
      %53 = dma.hbm_to_vmem [thread:$0]  %s4, 512, %s48, [#allocation6], 128, 128, 8
    $region21: #{tpu_custom_call.1} parent=1 // pred_fallthru
      _
    // Predicated region
    $region22: #{tpu_custom_call.1} parent=1 // pred_check
      _
    $region23: #{tpu_custom_call.1} parent=1 // pred_check_branch
      %55 = sbr.rel (0) target = $region25
    $region24: #{tpu_custom_call.1} parent=1 // pred_region
      _
    $region25: #{tpu_custom_call.1} parent=1 // pred_fallthru
      _
    // Predicated region
    $region26: #{tpu_custom_call.1} parent=1 // pred_check
      _
    $region27: #{tpu_custom_call.1} parent=1 // pred_check_branch
      %57 = sbr.rel (0) target = $region29
    $region28: #{tpu_custom_call.1} parent=1 // pred_region
      %58 = dma.done [#allocation3], 256
    $region29: #{tpu_custom_call.1} parent=1 // pred_fallthru
      _
    // Predicated region
    $region30: #{tpu_custom_call.1} parent=1 // pred_check
      _
    $region31: #{tpu_custom_call.1} parent=1 // pred_check_branch
      %60 = sbr.rel (0) target = $region33
    $region32: #{tpu_custom_call.1} parent=1 // pred_region
      %61 = dma.done [#allocation6], 512
    $region33: #{tpu_custom_call.1} parent=1 // pred_fallthru
      _
    // Predicated region
    $region34: #{tpu_custom_call.1} parent=1 // pred_check
      _
    $region35: #{tpu_custom_call.1} parent=1 // pred_check_branch
      %63 = sbr.rel (0) target = $region37
    $region36: #{tpu_custom_call.1} parent=1 // pred_region
      %64 = dma.done [#allocation6], 512
    $region37: #{tpu_custom_call.1} parent=1 // pred_fallthru
      _
    %v65 = vld [vmem:[#allocation2] sm:$0xff]
    %v66 = vld [vmem:[#allocation2 + $0x8] sm:$0xff]
    %v67 = vld [vmem:[#allocation5] sm:$0xff]
    %v68 = vld [vmem:[#allocation5 + $0x8] sm:$0xff]
    %v69 = vld [vmem:[#allocation5 + $0x10] sm:$0xff]
    %v70 = vld [vmem:[#allocation5 + $0x18] sm:$0xff]
    %v71 = vld [vmem:[%s2] sm:$0x1]
    %v73 = vlaneseq
    %v74 = vshrl.u32 %v73, 7
    %v75 = vsub.s32 0, %v74
    %v76 = vrot.slane %v71, %v75
    %vm78 = vcmask 261120
    %v80 = vsel %vm78, %v65, 0
    %v83 = vsel %vm78, %v66, 0
    %85 = vmatprep.subr.mxu0 0.0
    %86 = vmatpush1.msra.mxu0 %v67
    %87 = vmatprep.subr.mxu0 0.0
    %88 = vmatpush1.msra.mxu0 %v68
    %89 = vmatprep.subr.mxu0 0.0
    %90 = vmatpush1.msra.mxu0 %v69
    %91 = vmatprep.subr.mxu0 0.0
    %92 = vmatpush1.msra.mxu0 %v70
    %93 = vmatprep.subr.mxu0 0.0
    %94 = vmatpush1.msra.mxu0 0.0
    %95 = vmatprep.subr.mxu0 0.0
    %96 = vmatpush1.msra.mxu0 0.0
    %97 = vmatprep.subr.mxu0 0.0
    %98 = vmatpush1.msra.mxu0 0.0
    %99 = vmatprep.subr.mxu0 0.0
    %100 = vmatpush1.msra.mxu0 0.0
    %101 = vmatprep.subr.mxu0 0.0
    %102 = vmatpush1.msra.mxu0 0.0
    %103 = vmatprep.subr.mxu0 0.0
    %104 = vmatpush1.msra.mxu0 0.0
    %105 = vmatprep.subr.mxu0 0.0
    %106 = vmatpush1.msra.mxu0 0.0
    %107 = vmatprep.subr.mxu0 0.0
    %108 = vmatpush1.msra.mxu0 0.0
    %109 = vmatprep.subr.mxu0 0.0
    %110 = vmatpush1.msra.mxu0 0.0
    %111 = vmatprep.subr.mxu0 0.0
    %112 = vmatpush1.msra.mxu0 0.0
    %113 = vmatprep.subr.mxu0 0.0
    %114 = vmatpush1.msra.mxu0 0.0
    %115 = vmatprep.subr.mxu0 0.0
    %116 = vmatpush1.msra.mxu0 0.0
    %117 = vmatprep.subr.mxu0 0.0
    %118 = vmatpush1.msra.mxu0 0.0
    %119 = vmatprep.subr.mxu0 0.0
    %120 = vmatpush1.msra.mxu0 0.0
    %121 = vmatprep.subr.mxu0 0.0
    %122 = vmatpush1.msra.mxu0 0.0
    %123 = vmatprep.subr.mxu0 0.0
    %124 = vmatpush1.msra.mxu0 0.0
    %125 = vmatprep.subr.mxu0 0.0
    %126 = vmatpush1.msra.mxu0 0.0
    %127 = vmatprep.subr.mxu0 0.0
    %128 = vmatpush1.msra.mxu0 0.0
    %129 = vmatprep.subr.mxu0 0.0
    %130 = vmatpush1.msra.mxu0 0.0
    %131 = vmatprep.subr.mxu0 0.0
    %132 = vmatpush1.msra.mxu0 0.0
    %133 = vmatprep.subr.mxu0 0.0
    %134 = vmatpush1.msra.mxu0 0.0
    %135 = vmatprep.subr.mxu0 0.0
    %136 = vmatpush1.msra.mxu0 0.0
    %137 = vmatprep.subr.mxu0 0.0
    %138 = vmatpush1.msra.mxu0 0.0
    %139 = vmatprep.subr.mxu0 0.0
    %140 = vmatpush1.msra.mxu0 0.0
    %141 = vmatprep.subr.mxu0 0.0
    %142 = vmatpush1.msra.mxu0 0.0
    %143 = vmatprep.subr.mxu0 0.0
    %144 = vmatpush1.msra.mxu0 0.0
    %145 = vmatprep.subr.mxu0 0.0
    %146 = vmatpush1.msra.mxu0 0.0
    %147 = vmatprep.subr.mxu0 0.0
    %148 = vmatpush1.msra.mxu0 0.0
    %149 = vmatprep.mubr.f32.mxu0 0.0
    %150 = vmatmul.mubr.f32.gmra.mrb[0].mxu0 %v80
    %v151 = vpop.f32.mrb[0].mxu0
    %v152 = vadd.f32 %v76, %v151
    %v153 = vpop.f32.mrb[0].mxu0
    %154 = vmatprep.mubr.f32.mxu0 0.0
    %155 = vmatmul.mubr.f32.gmra.mrb[0].mxu0 %v83
    %v156 = vpop.f32.mrb[0].mxu0
    %v157 = vadd.f32 %v76, %v156
    %v158 = vpop.f32.mrb[0].mxu0
    %159 = vdwg.mxu0
    %161 = vrot.lane.b32.xlu0 %v152, 120
    %v162 = vpop.permute.xlu0 %161
    %163 = vrot.lane.b32.xlu0 %v152, 112
    %v164 = vpop.permute.xlu0 %163
    %165 = vrot.lane.b32.xlu0 %v152, 104
    %v166 = vpop.permute.xlu0 %165
    %168 = vrot.lane.b32.xlu0 %v157, 120
    %v169 = vpop.permute.xlu0 %168
    %170 = vrot.lane.b32.xlu0 %v157, 112
    %v171 = vpop.permute.xlu0 %170
    %172 = vrot.lane.b32.xlu0 %v157, 104
    %v173 = vpop.permute.xlu0 %172
    %v174 = vld [vmem:[%s3] sm:$0xff]
    %175 = vrot.lane.b32.xlu0 %v152, 96
    %v176 = vpop.permute.xlu0 %175
    %vm177 = vcmask 64512
    %v178 = vsel %vm177, %v152, 0
    %v180 = vsel %vm177, %v176, 0
    %182 = vmatprep.subr.mxu0 0.0
    %183 = vmatpush1.xpose.msra.mxu0 %v180
    %184 = vmatprep.subr.mxu0 0.0
    %185 = vmatpush1.xpose.msra.mxu0 0.0
    %186 = vmatprep.subr.mxu0 0.0
    %187 = vmatpush1.xpose.msra.mxu0 0.0
    %188 = vmatprep.subr.mxu0 0.0
    %189 = vmatpush1.xpose.msra.mxu0 0.0
    %190 = vmatprep.subr.mxu0 0.0
    %191 = vmatpush1.xpose.msra.mxu0 0.0
    %192 = vmatprep.subr.mxu0 0.0
    %193 = vmatpush1.xpose.msra.mxu0 0.0
    %194 = vmatprep.subr.mxu0 0.0
    %195 = vmatpush1.xpose.msra.mxu0 0.0
    %196 = vmatprep.subr.mxu0 0.0
    %197 = vmatpush1.xpose.msra.mxu0 0.0
    %198 = vmatprep.subr.mxu0 0.0
    %199 = vmatpush1.xpose.msra.mxu0 0.0
    %200 = vmatprep.subr.mxu0 0.0
    %201 = vmatpush1.xpose.msra.mxu0 0.0
    %202 = vmatprep.subr.mxu0 0.0
    %203 = vmatpush1.xpose.msra.mxu0 0.0
    %204 = vmatprep.subr.mxu0 0.0
    %205 = vmatpush1.xpose.msra.mxu0 0.0
    %206 = vmatprep.subr.mxu0 0.0
    %207 = vmatpush1.xpose.msra.mxu0 0.0
    %208 = vmatprep.subr.mxu0 0.0
    %209 = vmatpush1.xpose.msra.mxu0 0.0
    %210 = vmatprep.subr.mxu0 0.0
    %211 = vmatpush1.xpose.msra.mxu0 0.0
    %212 = vmatprep.subr.mxu0 0.0
    %213 = vmatpush1.xpose.msra.mxu0 0.0
    %214 = vmatprep.subr.mxu0 0.0
    %215 = vmatpush1.xpose.msra.mxu0 0.0
    %216 = vmatprep.subr.mxu0 0.0
    %217 = vmatpush1.xpose.msra.mxu0 0.0
    %218 = vmatprep.subr.mxu0 0.0
    %219 = vmatpush1.xpose.msra.mxu0 0.0
    %220 = vmatprep.subr.mxu0 0.0
    %221 = vmatpush1.xpose.msra.mxu0 0.0
    %222 = vmatprep.subr.mxu0 0.0
    %223 = vmatpush1.xpose.msra.mxu0 0.0
    %224 = vmatprep.subr.mxu0 0.0
    %225 = vmatpush1.xpose.msra.mxu0 0.0
    %226 = vmatprep.subr.mxu0 0.0
    %227 = vmatpush1.xpose.msra.mxu0 0.0
    %228 = vmatprep.subr.mxu0 0.0
    %229 = vmatpush1.xpose.msra.mxu0 0.0
    %230 = vmatprep.subr.mxu0 0.0
    %231 = vmatpush1.xpose.msra.mxu0 0.0
    %232 = vmatprep.subr.mxu0 0.0
    %233 = vmatpush1.xpose.msra.mxu0 0.0
    %234 = vmatprep.subr.mxu0 0.0
    %235 = vmatpush1.xpose.msra.mxu0 0.0
    %236 = vmatprep.subr.mxu0 0.0
    %237 = vmatpush1.xpose.msra.mxu0 0.0
    %238 = vmatprep.subr.mxu0 0.0
    %239 = vmatpush1.xpose.msra.mxu0 0.0
    %240 = vmatprep.subr.mxu0 0.0
    %241 = vmatpush1.xpose.msra.mxu0 0.0
    %242 = vmatprep.subr.mxu0 0.0
    %243 = vmatpush1.xpose.msra.mxu0 0.0
    %244 = vmatprep.subr.mxu0 0.0
    %245 = vmatpush1.xpose.msra.mxu0 0.0
    %246 = vmatprep.mubr.f32.mxu0 0.0
    %247 = vmatmul.mubr.f32.gmra.mrb[0].mxu0 %v178
    %v248 = vpop.f32.mrb[0].mxu0
    %v249 = vadd.f32 %v174, %v248
    %v250 = vpop.f32.mrb[0].mxu0
    %251 = vdwg.mxu0
    %252 = vrot.lane.b32.xlu0 %v162, 96
    %v253 = vpop.permute.xlu0 %252
    %v254 = vsel %vm177, %v162, 0
    %v256 = vsel %vm177, %v253, 0
    %258 = vmatprep.subr.mxu0 0.0
    %259 = vmatpush1.xpose.msra.mxu0 %v256
    %260 = vmatprep.subr.mxu0 0.0
    %261 = vmatpush1.xpose.msra.mxu0 0.0
    %262 = vmatprep.subr.mxu0 0.0
    %263 = vmatpush1.xpose.msra.mxu0 0.0
    %264 = vmatprep.subr.mxu0 0.0
    %265 = vmatpush1.xpose.msra.mxu0 0.0
    %266 = vmatprep.subr.mxu0 0.0
    %267 = vmatpush1.xpose.msra.mxu0 0.0
    %268 = vmatprep.subr.mxu0 0.0
    %269 = vmatpush1.xpose.msra.mxu0 0.0
    %270 = vmatprep.subr.mxu0 0.0
    %271 = vmatpush1.xpose.msra.mxu0 0.0
    %272 = vmatprep.subr.mxu0 0.0
    %273 = vmatpush1.xpose.msra.mxu0 0.0
    %274 = vmatprep.subr.mxu0 0.0
    %275 = vmatpush1.xpose.msra.mxu0 0.0
    %276 = vmatprep.subr.mxu0 0.0
    %277 = vmatpush1.xpose.msra.mxu0 0.0
    %278 = vmatprep.subr.mxu0 0.0
    %279 = vmatpush1.xpose.msra.mxu0 0.0
    %280 = vmatprep.subr.mxu0 0.0
    %281 = vmatpush1.xpose.msra.mxu0 0.0
    %282 = vmatprep.subr.mxu0 0.0
    %283 = vmatpush1.xpose.msra.mxu0 0.0
    %284 = vmatprep.subr.mxu0 0.0
    %285 = vmatpush1.xpose.msra.mxu0 0.0
    %286 = vmatprep.subr.mxu0 0.0
    %287 = vmatpush1.xpose.msra.mxu0 0.0
    %288 = vmatprep.subr.mxu0 0.0
    %289 = vmatpush1.xpose.msra.mxu0 0.0
    %290 = vmatprep.subr.mxu0 0.0
    %291 = vmatpush1.xpose.msra.mxu0 0.0
    %292 = vmatprep.subr.mxu0 0.0
    %293 = vmatpush1.xpose.msra.mxu0 0.0
    %294 = vmatprep.subr.mxu0 0.0
    %295 = vmatpush1.xpose.msra.mxu0 0.0
    %296 = vmatprep.subr.mxu0 0.0
    %297 = vmatpush1.xpose.msra.mxu0 0.0
    %298 = vmatprep.subr.mxu0 0.0
    %299 = vmatpush1.xpose.msra.mxu0 0.0
    %300 = vmatprep.subr.mxu0 0.0
    %301 = vmatpush1.xpose.msra.mxu0 0.0
    %302 = vmatprep.subr.mxu0 0.0
    %303 = vmatpush1.xpose.msra.mxu0 0.0
    %304 = vmatprep.subr.mxu0 0.0
    %305 = vmatpush1.xpose.msra.mxu0 0.0
    %306 = vmatprep.subr.mxu0 0.0
    %307 = vmatpush1.xpose.msra.mxu0 0.0
    %308 = vmatprep.subr.mxu0 0.0
    %309 = vmatpush1.xpose.msra.mxu0 0.0
    %310 = vmatprep.subr.mxu0 0.0
    %311 = vmatpush1.xpose.msra.mxu0 0.0
    %312 = vmatprep.subr.mxu0 0.0
    %313 = vmatpush1.xpose.msra.mxu0 0.0
    %314 = vmatprep.subr.mxu0 0.0
    %315 = vmatpush1.xpose.msra.mxu0 0.0
    %316 = vmatprep.subr.mxu0 0.0
    %317 = vmatpush1.xpose.msra.mxu0 0.0
    %318 = vmatprep.subr.mxu0 0.0
    %319 = vmatpush1.xpose.msra.mxu0 0.0
    %320 = vmatprep.subr.mxu0 0.0
    %321 = vmatpush1.xpose.msra.mxu0 0.0
    %322 = vmatprep.mubr.f32.mxu0 0.0
    %323 = vmatmul.mubr.f32.gmra.mrb[0].mxu0 %v254
    %v324 = vpop.f32.mrb[0].mxu0
    %v325 = vadd.f32 %v174, %v324
    %v326 = vpop.f32.mrb[0].mxu0
    %327 = vdwg.mxu0
    %328 = vrot.lane.b32.xlu0 %v164, 96
    %v329 = vpop.permute.xlu0 %328
    %v330 = vsel %vm177, %v164, 0
    %v332 = vsel %vm177, %v329, 0
    %334 = vmatprep.subr.mxu0 0.0
    %335 = vmatpush1.xpose.msra.mxu0 %v332
    %336 = vmatprep.subr.mxu0 0.0
    %337 = vmatpush1.xpose.msra.mxu0 0.0
    %338 = vmatprep.subr.mxu0 0.0
    %339 = vmatpush1.xpose.msra.mxu0 0.0
    %340 = vmatprep.subr.mxu0 0.0
    %341 = vmatpush1.xpose.msra.mxu0 0.0
    %342 = vmatprep.subr.mxu0 0.0
    %343 = vmatpush1.xpose.msra.mxu0 0.0
    %344 = vmatprep.subr.mxu0 0.0
    %345 = vmatpush1.xpose.msra.mxu0 0.0
    %346 = vmatprep.subr.mxu0 0.0
    %347 = vmatpush1.xpose.msra.mxu0 0.0
    %348 = vmatprep.subr.mxu0 0.0
    %349 = vmatpush1.xpose.msra.mxu0 0.0
    %350 = vmatprep.subr.mxu0 0.0
    %351 = vmatpush1.xpose.msra.mxu0 0.0
    %352 = vmatprep.subr.mxu0 0.0
    %353 = vmatpush1.xpose.msra.mxu0 0.0
    %354 = vmatprep.subr.mxu0 0.0
    %355 = vmatpush1.xpose.msra.mxu0 0.0
    %356 = vmatprep.subr.mxu0 0.0
    %357 = vmatpush1.xpose.msra.mxu0 0.0
    %358 = vmatprep.subr.mxu0 0.0
    %359 = vmatpush1.xpose.msra.mxu0 0.0
    %360 = vmatprep.subr.mxu0 0.0
    %361 = vmatpush1.xpose.msra.mxu0 0.0
    %362 = vmatprep.subr.mxu0 0.0
    %363 = vmatpush1.xpose.msra.mxu0 0.0
    %364 = vmatprep.subr.mxu0 0.0
    %365 = vmatpush1.xpose.msra.mxu0 0.0
    %366 = vmatprep.subr.mxu0 0.0
    %367 = vmatpush1.xpose.msra.mxu0 0.0
    %368 = vmatprep.subr.mxu0 0.0
    %369 = vmatpush1.xpose.msra.mxu0 0.0
    %370 = vmatprep.subr.mxu0 0.0
    %371 = vmatpush1.xpose.msra.mxu0 0.0
    %372 = vmatprep.subr.mxu0 0.0
    %373 = vmatpush1.xpose.msra.mxu0 0.0
    %374 = vmatprep.subr.mxu0 0.0
    %375 = vmatpush1.xpose.msra.mxu0 0.0
    %376 = vmatprep.subr.mxu0 0.0
    %377 = vmatpush1.xpose.msra.mxu0 0.0
    %378 = vmatprep.subr.mxu0 0.0
    %379 = vmatpush1.xpose.msra.mxu0 0.0
    %380 = vmatprep.subr.mxu0 0.0
    %381 = vmatpush1.xpose.msra.mxu0 0.0
    %382 = vmatprep.subr.mxu0 0.0
    %383 = vmatpush1.xpose.msra.mxu0 0.0
    %384 = vmatprep.subr.mxu0 0.0
    %385 = vmatpush1.xpose.msra.mxu0 0.0
    %386 = vmatprep.subr.mxu0 0.0
    %387 = vmatpush1.xpose.msra.mxu0 0.0
    %388 = vmatprep.subr.mxu0 0.0
    %389 = vmatpush1.xpose.msra.mxu0 0.0
    %390 = vmatprep.subr.mxu0 0.0
    %391 = vmatpush1.xpose.msra.mxu0 0.0
    %392 = vmatprep.subr.mxu0 0.0
    %393 = vmatpush1.xpose.msra.mxu0 0.0
    %394 = vmatprep.subr.mxu0 0.0
    %395 = vmatpush1.xpose.msra.mxu0 0.0
    %396 = vmatprep.subr.mxu0 0.0
    %397 = vmatpush1.xpose.msra.mxu0 0.0
    %398 = vmatprep.mubr.f32.mxu0 0.0
    %399 = vmatmul.mubr.f32.gmra.mrb[0].mxu0 %v330
    %v400 = vpop.f32.mrb[0].mxu0
    %v401 = vadd.f32 %v174, %v400
    %v402 = vpop.f32.mrb[0].mxu0
    %403 = vdwg.mxu0
    %404 = vrot.lane.b32.xlu0 %v166, 96
    %v405 = vpop.permute.xlu0 %404
    %v406 = vsel %vm177, %v166, 0
    %v408 = vsel %vm177, %v405, 0
    %410 = vmatprep.subr.mxu0 0.0
    %411 = vmatpush1.xpose.msra.mxu0 %v408
    %412 = vmatprep.subr.mxu0 0.0
    %413 = vmatpush1.xpose.msra.mxu0 0.0
    %414 = vmatprep.subr.mxu0 0.0
    %415 = vmatpush1.xpose.msra.mxu0 0.0
    %416 = vmatprep.subr.mxu0 0.0
    %417 = vmatpush1.xpose.msra.mxu0 0.0
    %418 = vmatprep.subr.mxu0 0.0
    %419 = vmatpush1.xpose.msra.mxu0 0.0
    %420 = vmatprep.subr.mxu0 0.0
    %421 = vmatpush1.xpose.msra.mxu0 0.0
    %422 = vmatprep.subr.mxu0 0.0
    %423 = vmatpush1.xpose.msra.mxu0 0.0
    %424 = vmatprep.subr.mxu0 0.0
    %425 = vmatpush1.xpose.msra.mxu0 0.0
    %426 = vmatprep.subr.mxu0 0.0
    %427 = vmatpush1.xpose.msra.mxu0 0.0
    %428 = vmatprep.subr.mxu0 0.0
    %429 = vmatpush1.xpose.msra.mxu0 0.0
    %430 = vmatprep.subr.mxu0 0.0
    %431 = vmatpush1.xpose.msra.mxu0 0.0
    %432 = vmatprep.subr.mxu0 0.0
    %433 = vmatpush1.xpose.msra.mxu0 0.0
    %434 = vmatprep.subr.mxu0 0.0
    %435 = vmatpush1.xpose.msra.mxu0 0.0
    %436 = vmatprep.subr.mxu0 0.0
    %437 = vmatpush1.xpose.msra.mxu0 0.0
    %438 = vmatprep.subr.mxu0 0.0
    %439 = vmatpush1.xpose.msra.mxu0 0.0
    %440 = vmatprep.subr.mxu0 0.0
    %441 = vmatpush1.xpose.msra.mxu0 0.0
    %442 = vmatprep.subr.mxu0 0.0
    %443 = vmatpush1.xpose.msra.mxu0 0.0
    %444 = vmatprep.subr.mxu0 0.0
    %445 = vmatpush1.xpose.msra.mxu0 0.0
    %446 = vmatprep.subr.mxu0 0.0
    %447 = vmatpush1.xpose.msra.mxu0 0.0
    %448 = vmatprep.subr.mxu0 0.0
    %449 = vmatpush1.xpose.msra.mxu0 0.0
    %450 = vmatprep.subr.mxu0 0.0
    %451 = vmatpush1.xpose.msra.mxu0 0.0
    %452 = vmatprep.subr.mxu0 0.0
    %453 = vmatpush1.xpose.msra.mxu0 0.0
    %454 = vmatprep.subr.mxu0 0.0
    %455 = vmatpush1.xpose.msra.mxu0 0.0
    %456 = vmatprep.subr.mxu0 0.0
    %457 = vmatpush1.xpose.msra.mxu0 0.0
    %458 = vmatprep.subr.mxu0 0.0
    %459 = vmatpush1.xpose.msra.mxu0 0.0
    %460 = vmatprep.subr.mxu0 0.0
    %461 = vmatpush1.xpose.msra.mxu0 0.0
    %462 = vmatprep.subr.mxu0 0.0
    %463 = vmatpush1.xpose.msra.mxu0 0.0
    %464 = vmatprep.subr.mxu0 0.0
    %465 = vmatpush1.xpose.msra.mxu0 0.0
    %466 = vmatprep.subr.mxu0 0.0
    %467 = vmatpush1.xpose.msra.mxu0 0.0
    %468 = vmatprep.subr.mxu0 0.0
    %469 = vmatpush1.xpose.msra.mxu0 0.0
    %470 = vmatprep.subr.mxu0 0.0
    %471 = vmatpush1.xpose.msra.mxu0 0.0
    %472 = vmatprep.subr.mxu0 0.0
    %473 = vmatpush1.xpose.msra.mxu0 0.0
    %474 = vmatprep.mubr.f32.mxu0 0.0
    %475 = vmatmul.mubr.f32.gmra.mrb[0].mxu0 %v406
    %v476 = vpop.f32.mrb[0].mxu0
    %v477 = vadd.f32 %v174, %v476
    %v478 = vpop.f32.mrb[0].mxu0
    %479 = vdwg.mxu0
    %480 = vrot.lane.b32.xlu0 %v157, 96
    %v481 = vpop.permute.xlu0 %480
    %v482 = vsel %vm177, %v157, 0
    %v484 = vsel %vm177, %v481, 0
    %486 = vmatprep.subr.mxu0 0.0
    %487 = vmatpush1.xpose.msra.mxu0 %v484
    %488 = vmatprep.subr.mxu0 0.0
    %489 = vmatpush1.xpose.msra.mxu0 0.0
    %490 = vmatprep.subr.mxu0 0.0
    %491 = vmatpush1.xpose.msra.mxu0 0.0
    %492 = vmatprep.subr.mxu0 0.0
    %493 = vmatpush1.xpose.msra.mxu0 0.0
    %494 = vmatprep.subr.mxu0 0.0
    %495 = vmatpush1.xpose.msra.mxu0 0.0
    %496 = vmatprep.subr.mxu0 0.0
    %497 = vmatpush1.xpose.msra.mxu0 0.0
    %498 = vmatprep.subr.mxu0 0.0
    %499 = vmatpush1.xpose.msra.mxu0 0.0
    %500 = vmatprep.subr.mxu0 0.0
    %501 = vmatpush1.xpose.msra.mxu0 0.0
    %502 = vmatprep.subr.mxu0 0.0
    %503 = vmatpush1.xpose.msra.mxu0 0.0
    %504 = vmatprep.subr.mxu0 0.0
    %505 = vmatpush1.xpose.msra.mxu0 0.0
    %506 = vmatprep.subr.mxu0 0.0
    %507 = vmatpush1.xpose.msra.mxu0 0.0
    %508 = vmatprep.subr.mxu0 0.0
    %509 = vmatpush1.xpose.msra.mxu0 0.0
    %510 = vmatprep.subr.mxu0 0.0
    %511 = vmatpush1.xpose.msra.mxu0 0.0
    %512 = vmatprep.subr.mxu0 0.0
    %513 = vmatpush1.xpose.msra.mxu0 0.0
    %514 = vmatprep.subr.mxu0 0.0
    %515 = vmatpush1.xpose.msra.mxu0 0.0
    %516 = vmatprep.subr.mxu0 0.0
    %517 = vmatpush1.xpose.msra.mxu0 0.0
    %518 = vmatprep.subr.mxu0 0.0
    %519 = vmatpush1.xpose.msra.mxu0 0.0
    %520 = vmatprep.subr.mxu0 0.0
    %521 = vmatpush1.xpose.msra.mxu0 0.0
    %522 = vmatprep.subr.mxu0 0.0
    %523 = vmatpush1.xpose.msra.mxu0 0.0
    %524 = vmatprep.subr.mxu0 0.0
    %525 = vmatpush1.xpose.msra.mxu0 0.0
    %526 = vmatprep.subr.mxu0 0.0
    %527 = vmatpush1.xpose.msra.mxu0 0.0
    %528 = vmatprep.subr.mxu0 0.0
    %529 = vmatpush1.xpose.msra.mxu0 0.0
    %530 = vmatprep.subr.mxu0 0.0
    %531 = vmatpush1.xpose.msra.mxu0 0.0
    %532 = vmatprep.subr.mxu0 0.0
    %533 = vmatpush1.xpose.msra.mxu0 0.0
    %534 = vmatprep.subr.mxu0 0.0
    %535 = vmatpush1.xpose.msra.mxu0 0.0
    %536 = vmatprep.subr.mxu0 0.0
    %537 = vmatpush1.xpose.msra.mxu0 0.0
    %538 = vmatprep.subr.mxu0 0.0
    %539 = vmatpush1.xpose.msra.mxu0 0.0
    %540 = vmatprep.subr.mxu0 0.0
    %541 = vmatpush1.xpose.msra.mxu0 0.0
    %542 = vmatprep.subr.mxu0 0.0
    %543 = vmatpush1.xpose.msra.mxu0 0.0
    %544 = vmatprep.subr.mxu0 0.0
    %545 = vmatpush1.xpose.msra.mxu0 0.0
    %546 = vmatprep.subr.mxu0 0.0
    %547 = vmatpush1.xpose.msra.mxu0 0.0
    %548 = vmatprep.subr.mxu0 0.0
    %549 = vmatpush1.xpose.msra.mxu0 0.0
    %550 = vmatprep.mubr.f32.mxu0 0.0
    %551 = vmatmul.mubr.f32.gmra.mrb[0].mxu0 %v482
    %v552 = vpop.f32.mrb[0].mxu0
    %v553 = vadd.f32 %v174, %v552
    %v554 = vpop.f32.mrb[0].mxu0
    %555 = vdwg.mxu0
    %556 = vrot.lane.b32.xlu0 %v169, 96
    %v557 = vpop.permute.xlu0 %556
    %v558 = vsel %vm177, %v169, 0
    %v560 = vsel %vm177, %v557, 0
    %562 = vmatprep.subr.mxu0 0.0
    %563 = vmatpush1.xpose.msra.mxu0 %v560
    %564 = vmatprep.subr.mxu0 0.0
    %565 = vmatpush1.xpose.msra.mxu0 0.0
    %566 = vmatprep.subr.mxu0 0.0
    %567 = vmatpush1.xpose.msra.mxu0 0.0
    %568 = vmatprep.subr.mxu0 0.0
    %569 = vmatpush1.xpose.msra.mxu0 0.0
    %570 = vmatprep.subr.mxu0 0.0
    %571 = vmatpush1.xpose.msra.mxu0 0.0
    %572 = vmatprep.subr.mxu0 0.0
    %573 = vmatpush1.xpose.msra.mxu0 0.0
    %574 = vmatprep.subr.mxu0 0.0
    %575 = vmatpush1.xpose.msra.mxu0 0.0
    %576 = vmatprep.subr.mxu0 0.0
    %577 = vmatpush1.xpose.msra.mxu0 0.0
    %578 = vmatprep.subr.mxu0 0.0
    %579 = vmatpush1.xpose.msra.mxu0 0.0
    %580 = vmatprep.subr.mxu0 0.0
    %581 = vmatpush1.xpose.msra.mxu0 0.0
    %582 = vmatprep.subr.mxu0 0.0
    %583 = vmatpush1.xpose.msra.mxu0 0.0
    %584 = vmatprep.subr.mxu0 0.0
    %585 = vmatpush1.xpose.msra.mxu0 0.0
    %586 = vmatprep.subr.mxu0 0.0
    %587 = vmatpush1.xpose.msra.mxu0 0.0
    %588 = vmatprep.subr.mxu0 0.0
    %589 = vmatpush1.xpose.msra.mxu0 0.0
    %590 = vmatprep.subr.mxu0 0.0
    %591 = vmatpush1.xpose.msra.mxu0 0.0
    %592 = vmatprep.subr.mxu0 0.0
    %593 = vmatpush1.xpose.msra.mxu0 0.0
    %594 = vmatprep.subr.mxu0 0.0
    %595 = vmatpush1.xpose.msra.mxu0 0.0
    %596 = vmatprep.subr.mxu0 0.0
    %597 = vmatpush1.xpose.msra.mxu0 0.0
    %598 = vmatprep.subr.mxu0 0.0
    %599 = vmatpush1.xpose.msra.mxu0 0.0
    %600 = vmatprep.subr.mxu0 0.0
    %601 = vmatpush1.xpose.msra.mxu0 0.0
    %602 = vmatprep.subr.mxu0 0.0
    %603 = vmatpush1.xpose.msra.mxu0 0.0
    %604 = vmatprep.subr.mxu0 0.0
    %605 = vmatpush1.xpose.msra.mxu0 0.0
    %606 = vmatprep.subr.mxu0 0.0
    %607 = vmatpush1.xpose.msra.mxu0 0.0
    %608 = vmatprep.subr.mxu0 0.0
    %609 = vmatpush1.xpose.msra.mxu0 0.0
    %610 = vmatprep.subr.mxu0 0.0
    %611 = vmatpush1.xpose.msra.mxu0 0.0
    %612 = vmatprep.subr.mxu0 0.0
    %613 = vmatpush1.xpose.msra.mxu0 0.0
    %614 = vmatprep.subr.mxu0 0.0
    %615 = vmatpush1.xpose.msra.mxu0 0.0
    %616 = vmatprep.subr.mxu0 0.0
    %617 = vmatpush1.xpose.msra.mxu0 0.0
    %618 = vmatprep.subr.mxu0 0.0
    %619 = vmatpush1.xpose.msra.mxu0 0.0
    %620 = vmatprep.subr.mxu0 0.0
    %621 = vmatpush1.xpose.msra.mxu0 0.0
    %622 = vmatprep.subr.mxu0 0.0
    %623 = vmatpush1.xpose.msra.mxu0 0.0
    %624 = vmatprep.subr.mxu0 0.0
    %625 = vmatpush1.xpose.msra.mxu0 0.0
    %626 = vmatprep.mubr.f32.mxu0 0.0
    %627 = vmatmul.mubr.f32.gmra.mrb[0].mxu0 %v558
    %v628 = vpop.f32.mrb[0].mxu0
    %v629 = vadd.f32 %v174, %v628
    %v630 = vpop.f32.mrb[0].mxu0
    %631 = vdwg.mxu0
    %632 = vrot.lane.b32.xlu0 %v171, 96
    %v633 = vpop.permute.xlu0 %632
    %v634 = vsel %vm177, %v171, 0
    %v636 = vsel %vm177, %v633, 0
    %638 = vmatprep.subr.mxu0 0.0
    %639 = vmatpush1.xpose.msra.mxu0 %v636
    %640 = vmatprep.subr.mxu0 0.0
    %641 = vmatpush1.xpose.msra.mxu0 0.0
    %642 = vmatprep.subr.mxu0 0.0
    %643 = vmatpush1.xpose.msra.mxu0 0.0
    %644 = vmatprep.subr.mxu0 0.0
    %645 = vmatpush1.xpose.msra.mxu0 0.0
    %646 = vmatprep.subr.mxu0 0.0
    %647 = vmatpush1.xpose.msra.mxu0 0.0
    %648 = vmatprep.subr.mxu0 0.0
    %649 = vmatpush1.xpose.msra.mxu0 0.0
    %650 = vmatprep.subr.mxu0 0.0
    %651 = vmatpush1.xpose.msra.mxu0 0.0
    %652 = vmatprep.subr.mxu0 0.0
    %653 = vmatpush1.xpose.msra.mxu0 0.0
    %654 = vmatprep.subr.mxu0 0.0
    %655 = vmatpush1.xpose.msra.mxu0 0.0
    %656 = vmatprep.subr.mxu0 0.0
    %657 = vmatpush1.xpose.msra.mxu0 0.0
    %658 = vmatprep.subr.mxu0 0.0
    %659 = vmatpush1.xpose.msra.mxu0 0.0
    %660 = vmatprep.subr.mxu0 0.0
    %661 = vmatpush1.xpose.msra.mxu0 0.0
    %662 = vmatprep.subr.mxu0 0.0
    %663 = vmatpush1.xpose.msra.mxu0 0.0
    %664 = vmatprep.subr.mxu0 0.0
    %665 = vmatpush1.xpose.msra.mxu0 0.0
    %666 = vmatprep.subr.mxu0 0.0
    %667 = vmatpush1.xpose.msra.mxu0 0.0
    %668 = vmatprep.subr.mxu0 0.0
    %669 = vmatpush1.xpose.msra.mxu0 0.0
    %670 = vmatprep.subr.mxu0 0.0
    %671 = vmatpush1.xpose.msra.mxu0 0.0
    %672 = vmatprep.subr.mxu0 0.0
    %673 = vmatpush1.xpose.msra.mxu0 0.0
    %674 = vmatprep.subr.mxu0 0.0
    %675 = vmatpush1.xpose.msra.mxu0 0.0
    %676 = vmatprep.subr.mxu0 0.0
    %677 = vmatpush1.xpose.msra.mxu0 0.0
    %678 = vmatprep.subr.mxu0 0.0
    %679 = vmatpush1.xpose.msra.mxu0 0.0
    %680 = vmatprep.subr.mxu0 0.0
    %681 = vmatpush1.xpose.msra.mxu0 0.0
    %682 = vmatprep.subr.mxu0 0.0
    %683 = vmatpush1.xpose.msra.mxu0 0.0
    %684 = vmatprep.subr.mxu0 0.0
    %685 = vmatpush1.xpose.msra.mxu0 0.0
    %686 = vmatprep.subr.mxu0 0.0
    %687 = vmatpush1.xpose.msra.mxu0 0.0
    %688 = vmatprep.subr.mxu0 0.0
    %689 = vmatpush1.xpose.msra.mxu0 0.0
    %690 = vmatprep.subr.mxu0 0.0
    %691 = vmatpush1.xpose.msra.mxu0 0.0
    %692 = vmatprep.subr.mxu0 0.0
    %693 = vmatpush1.xpose.msra.mxu0 0.0
    %694 = vmatprep.subr.mxu0 0.0
    %695 = vmatpush1.xpose.msra.mxu0 0.0
    %696 = vmatprep.subr.mxu0 0.0
    %697 = vmatpush1.xpose.msra.mxu0 0.0
    %698 = vmatprep.subr.mxu0 0.0
    %699 = vmatpush1.xpose.msra.mxu0 0.0
    %700 = vmatprep.subr.mxu0 0.0
    %701 = vmatpush1.xpose.msra.mxu0 0.0
    %702 = vmatprep.mubr.f32.mxu0 0.0
    %703 = vmatmul.mubr.f32.gmra.mrb[0].mxu0 %v634
    %v704 = vpop.f32.mrb[0].mxu0
    %v705 = vadd.f32 %v174, %v704
    %v706 = vpop.f32.mrb[0].mxu0
    %707 = vdwg.mxu0
    %708 = vrot.lane.b32.xlu0 %v173, 96
    %v709 = vpop.permute.xlu0 %708
    %v710 = vsel %vm177, %v173, 0
    %v712 = vsel %vm177, %v709, 0
    %714 = vmatprep.subr.mxu0 0.0
    %715 = vmatpush1.xpose.msra.mxu0 %v712
    %716 = vmatprep.subr.mxu0 0.0
    %717 = vmatpush1.xpose.msra.mxu0 0.0
    %718 = vmatprep.subr.mxu0 0.0
    %719 = vmatpush1.xpose.msra.mxu0 0.0
    %720 = vmatprep.subr.mxu0 0.0
    %721 = vmatpush1.xpose.msra.mxu0 0.0
    %722 = vmatprep.subr.mxu0 0.0
    %723 = vmatpush1.xpose.msra.mxu0 0.0
    %724 = vmatprep.subr.mxu0 0.0
    %725 = vmatpush1.xpose.msra.mxu0 0.0
    %726 = vmatprep.subr.mxu0 0.0
    %727 = vmatpush1.xpose.msra.mxu0 0.0
    %728 = vmatprep.subr.mxu0 0.0
    %729 = vmatpush1.xpose.msra.mxu0 0.0
    %730 = vmatprep.subr.mxu0 0.0
    %731 = vmatpush1.xpose.msra.mxu0 0.0
    %732 = vmatprep.subr.mxu0 0.0
    %733 = vmatpush1.xpose.msra.mxu0 0.0
    %734 = vmatprep.subr.mxu0 0.0
    %735 = vmatpush1.xpose.msra.mxu0 0.0
    %736 = vmatprep.subr.mxu0 0.0
    %737 = vmatpush1.xpose.msra.mxu0 0.0
    %738 = vmatprep.subr.mxu0 0.0
    %739 = vmatpush1.xpose.msra.mxu0 0.0
    %740 = vmatprep.subr.mxu0 0.0
    %741 = vmatpush1.xpose.msra.mxu0 0.0
    %742 = vmatprep.subr.mxu0 0.0
    %743 = vmatpush1.xpose.msra.mxu0 0.0
    %744 = vmatprep.subr.mxu0 0.0
    %745 = vmatpush1.xpose.msra.mxu0 0.0
    %746 = vmatprep.subr.mxu0 0.0
    %747 = vmatpush1.xpose.msra.mxu0 0.0
    %748 = vmatprep.subr.mxu0 0.0
    %749 = vmatpush1.xpose.msra.mxu0 0.0
    %750 = vmatprep.subr.mxu0 0.0
    %751 = vmatpush1.xpose.msra.mxu0 0.0
    %752 = vmatprep.subr.mxu0 0.0
    %753 = vmatpush1.xpose.msra.mxu0 0.0
    %754 = vmatprep.subr.mxu0 0.0
    %755 = vmatpush1.xpose.msra.mxu0 0.0
    %756 = vmatprep.subr.mxu0 0.0
    %757 = vmatpush1.xpose.msra.mxu0 0.0
    %758 = vmatprep.subr.mxu0 0.0
    %759 = vmatpush1.xpose.msra.mxu0 0.0
    %760 = vmatprep.subr.mxu0 0.0
    %761 = vmatpush1.xpose.msra.mxu0 0.0
    %762 = vmatprep.subr.mxu0 0.0
    %763 = vmatpush1.xpose.msra.mxu0 0.0
    %764 = vmatprep.subr.mxu0 0.0
    %765 = vmatpush1.xpose.msra.mxu0 0.0
    %766 = vmatprep.subr.mxu0 0.0
    %767 = vmatpush1.xpose.msra.mxu0 0.0
    %768 = vmatprep.subr.mxu0 0.0
    %769 = vmatpush1.xpose.msra.mxu0 0.0
    %770 = vmatprep.subr.mxu0 0.0
    %771 = vmatpush1.xpose.msra.mxu0 0.0
    %772 = vmatprep.subr.mxu0 0.0
    %773 = vmatpush1.xpose.msra.mxu0 0.0
    %774 = vmatprep.subr.mxu0 0.0
    %775 = vmatpush1.xpose.msra.mxu0 0.0
    %776 = vmatprep.subr.mxu0 0.0
    %777 = vmatpush1.xpose.msra.mxu0 0.0
    %778 = vmatprep.mubr.f32.mxu0 0.0
    %779 = vmatmul.mubr.f32.gmra.mrb[0].mxu0 %v710
    %v780 = vpop.f32.mrb[0].mxu0
    %v781 = vadd.f32 %v174, %v780
    %v782 = vpop.f32.mrb[0].mxu0
    %783 = vdwg.mxu0
    %v784 = vsel %vm177, %v249, -inf
    %785 = vmax.xlane.f32.xlu0 %v784
    %v786 = vpop.xlane.xlu0 %785
    %v787 = vsel %vm177, %v325, -inf
    %788 = vmax.xlane.f32.xlu0 %v787
    %v789 = vpop.xlane.xlu0 %788
    %v790 = vsel %vm177, %v401, -inf
    %791 = vmax.xlane.f32.xlu0 %v790
    %v792 = vpop.xlane.xlu0 %791
    %v793 = vsel %vm177, %v477, -inf
    %794 = vmax.xlane.f32.xlu0 %v793
    %v795 = vpop.xlane.xlu0 %794
    %v796 = vsel %vm177, %v553, -inf
    %797 = vmax.xlane.f32.xlu0 %v796
    %v798 = vpop.xlane.xlu0 %797
    %v799 = vsel %vm177, %v629, -inf
    %800 = vmax.xlane.f32.xlu0 %v799
    %v801 = vpop.xlane.xlu0 %800
    %v802 = vsel %vm177, %v705, -inf
    %803 = vmax.xlane.f32.xlu0 %v802
    %v804 = vpop.xlane.xlu0 %803
    %v805 = vsel %vm177, %v781, -inf
    %806 = vmax.xlane.f32.xlu0 %v805
    %v807 = vpop.xlane.xlu0 %806
    %v808 = vsub.f32 %v249, %v786
    %v809 = vsub.f32 %v325, %v789
    %v810 = vsub.f32 %v401, %v792
    %v811 = vsub.f32 %v477, %v795
    %v812 = vsub.f32 %v553, %v798
    %v813 = vsub.f32 %v629, %v801
    %v814 = vsub.f32 %v705, %v804
    %v815 = vsub.f32 %v781, %v807
    %v816 = vmul.f32 %v808, 1.442695
    %v817 = vpow.pop %v816
    %v818 = vmul.f32 %v809, 1.442695
    %v819 = vpow.pop %v818
    %v820 = vmul.f32 %v810, 1.442695
    %v821 = vpow.pop %v820
    %v822 = vmul.f32 %v811, 1.442695
    %v823 = vpow.pop %v822
    %v824 = vmul.f32 %v812, 1.442695
    %v825 = vpow.pop %v824
    %v826 = vmul.f32 %v813, 1.442695
    %v827 = vpow.pop %v826
    %v828 = vmul.f32 %v814, 1.442695
    %v829 = vpow.pop %v828
    %v830 = vmul.f32 %v815, 1.442695
    %v831 = vpow.pop %v830
    %v832 = vsel %vm177, %v817, 0.0
    %833 = vadd.xlane.f32.xlu0 %v832
    %v834 = vpop.xlane.xlu0 %833
    %v835 = vsel %vm177, %v819, 0.0
    %836 = vadd.xlane.f32.xlu0 %v835
    %v837 = vpop.xlane.xlu0 %836
    %v838 = vsel %vm177, %v821, 0.0
    %839 = vadd.xlane.f32.xlu0 %v838
    %v840 = vpop.xlane.xlu0 %839
    %v841 = vsel %vm177, %v823, 0.0
    %842 = vadd.xlane.f32.xlu0 %v841
    %v843 = vpop.xlane.xlu0 %842
    %v844 = vsel %vm177, %v825, 0.0
    %845 = vadd.xlane.f32.xlu0 %v844
    %v846 = vpop.xlane.xlu0 %845
    %v847 = vsel %vm177, %v827, 0.0
    %848 = vadd.xlane.f32.xlu0 %v847
    %v849 = vpop.xlane.xlu0 %848
    %v850 = vsel %vm177, %v829, 0.0
    %851 = vadd.xlane.f32.xlu0 %v850
    %v852 = vpop.xlane.xlu0 %851
    %v853 = vsel %vm177, %v831, 0.0
    %854 = vadd.xlane.f32.xlu0 %v853
    %v855 = vpop.xlane.xlu0 %854
    %v856 = vrcp.pop %v834
    %v857 = vrcp.pop %v837
    %v858 = vrcp.pop %v840
    %v859 = vrcp.pop %v843
    %v860 = vrcp.pop %v846
    %v861 = vrcp.pop %v849
    %v862 = vrcp.pop %v852
    %v863 = vrcp.pop %v855
    %v864 = vmul.f32 %v817, %v856
    %v865 = vmul.f32 %v819, %v857
    %v866 = vmul.f32 %v821, %v858
    %v867 = vmul.f32 %v823, %v859
    %v868 = vmul.f32 %v825, %v860
    %v869 = vmul.f32 %v827, %v861
    %v870 = vmul.f32 %v829, %v862
    %v871 = vmul.f32 %v831, %v863
    %872 = vrot.lane.b32.xlu0 %v152, 64
    %v873 = vpop.permute.xlu0 %872
    %v876 = vsel %vm177, %v864, 0
    %878 = vmatprep.subr.mxu0 0.0
    %879 = vmatpush1.msra.mxu0 %v873
    %880 = vmatprep.subr.mxu0 0.0
    %881 = vmatpush1.msra.mxu0 0.0
    %882 = vmatprep.subr.mxu0 0.0
    %883 = vmatpush1.msra.mxu0 0.0
    %884 = vmatprep.subr.mxu0 0.0
    %885 = vmatpush1.msra.mxu0 0.0
    %886 = vmatprep.subr.mxu0 0.0
    %887 = vmatpush1.msra.mxu0 0.0
    %888 = vmatprep.subr.mxu0 0.0
    %889 = vmatpush1.msra.mxu0 0.0
    %890 = vmatprep.subr.mxu0 0.0
    %891 = vmatpush1.msra.mxu0 0.0
    %892 = vmatprep.subr.mxu0 0.0
    %893 = vmatpush1.msra.mxu0 0.0
    %894 = vmatprep.subr.mxu0 0.0
    %895 = vmatpush1.msra.mxu0 0.0
    %896 = vmatprep.subr.mxu0 0.0
    %897 = vmatpush1.msra.mxu0 0.0
    %898 = vmatprep.subr.mxu0 0.0
    %899 = vmatpush1.msra.mxu0 0.0
    %900 = vmatprep.subr.mxu0 0.0
    %901 = vmatpush1.msra.mxu0 0.0
    %902 = vmatprep.subr.mxu0 0.0
    %903 = vmatpush1.msra.mxu0 0.0
    %904 = vmatprep.subr.mxu0 0.0
    %905 = vmatpush1.msra.mxu0 0.0
    %906 = vmatprep.subr.mxu0 0.0
    %907 = vmatpush1.msra.mxu0 0.0
    %908 = vmatprep.subr.mxu0 0.0
    %909 = vmatpush1.msra.mxu0 0.0
    %910 = vmatprep.subr.mxu0 0.0
    %911 = vmatpush1.msra.mxu0 0.0
    %912 = vmatprep.subr.mxu0 0.0
    %913 = vmatpush1.msra.mxu0 0.0
    %914 = vmatprep.subr.mxu0 0.0
    %915 = vmatpush1.msra.mxu0 0.0
    %916 = vmatprep.subr.mxu0 0.0
    %917 = vmatpush1.msra.mxu0 0.0
    %918 = vmatprep.subr.mxu0 0.0
    %919 = vmatpush1.msra.mxu0 0.0
    %920 = vmatprep.subr.mxu0 0.0
    %921 = vmatpush1.msra.mxu0 0.0
    %922 = vmatprep.subr.mxu0 0.0
    %923 = vmatpush1.msra.mxu0 0.0
    %924 = vmatprep.subr.mxu0 0.0
    %925 = vmatpush1.msra.mxu0 0.0
    %926 = vmatprep.subr.mxu0 0.0
    %927 = vmatpush1.msra.mxu0 0.0
    %928 = vmatprep.subr.mxu0 0.0
    %929 = vmatpush1.msra.mxu0 0.0
    %930 = vmatprep.subr.mxu0 0.0
    %931 = vmatpush1.msra.mxu0 0.0
    %932 = vmatprep.subr.mxu0 0.0
    %933 = vmatpush1.msra.mxu0 0.0
    %934 = vmatprep.subr.mxu0 0.0
    %935 = vmatpush1.msra.mxu0 0.0
    %936 = vmatprep.subr.mxu0 0.0
    %937 = vmatpush1.msra.mxu0 0.0
    %938 = vmatprep.subr.mxu0 0.0
    %939 = vmatpush1.msra.mxu0 0.0
    %940 = vmatprep.subr.mxu0 0.0
    %941 = vmatpush1.msra.mxu0 0.0
    %942 = vmatprep.mubr.f32.mxu0 0.0
    %943 = vmatmul.mubr.f32.gmra.mrb[0].mxu0 %v876
    %v944 = vpop.f32.mrb[0].mxu0
    %v945 = vadd.f32 0.0, %v944
    %v946 = vpop.f32.mrb[0].mxu0
    %947 = vdwg.mxu0
    %948 = vrot.lane.b32.xlu0 %v162, 64
    %v949 = vpop.permute.xlu0 %948
    %v952 = vsel %vm177, %v865, 0
    %954 = vmatprep.subr.mxu0 0.0
    %955 = vmatpush1.msra.mxu0 %v949
    %956 = vmatprep.subr.mxu0 0.0
    %957 = vmatpush1.msra.mxu0 0.0
    %958 = vmatprep.subr.mxu0 0.0
    %959 = vmatpush1.msra.mxu0 0.0
    %960 = vmatprep.subr.mxu0 0.0
    %961 = vmatpush1.msra.mxu0 0.0
    %962 = vmatprep.subr.mxu0 0.0
    %963 = vmatpush1.msra.mxu0 0.0
    %964 = vmatprep.subr.mxu0 0.0
    %965 = vmatpush1.msra.mxu0 0.0
    %966 = vmatprep.subr.mxu0 0.0
    %967 = vmatpush1.msra.mxu0 0.0
    %968 = vmatprep.subr.mxu0 0.0
    %969 = vmatpush1.msra.mxu0 0.0
    %970 = vmatprep.subr.mxu0 0.0
    %971 = vmatpush1.msra.mxu0 0.0
    %972 = vmatprep.subr.mxu0 0.0
    %973 = vmatpush1.msra.mxu0 0.0
    %974 = vmatprep.subr.mxu0 0.0
    %975 = vmatpush1.msra.mxu0 0.0
    %976 = vmatprep.subr.mxu0 0.0
    %977 = vmatpush1.msra.mxu0 0.0
    %978 = vmatprep.subr.mxu0 0.0
    %979 = vmatpush1.msra.mxu0 0.0
    %980 = vmatprep.subr.mxu0 0.0
    %981 = vmatpush1.msra.mxu0 0.0
    %982 = vmatprep.subr.mxu0 0.0
    %983 = vmatpush1.msra.mxu0 0.0
    %984 = vmatprep.subr.mxu0 0.0
    %985 = vmatpush1.msra.mxu0 0.0
    %986 = vmatprep.subr.mxu0 0.0
    %987 = vmatpush1.msra.mxu0 0.0
    %988 = vmatprep.subr.mxu0 0.0
    %989 = vmatpush1.msra.mxu0 0.0
    %990 = vmatprep.subr.mxu0 0.0
    %991 = vmatpush1.msra.mxu0 0.0
    %992 = vmatprep.subr.mxu0 0.0
    %993 = vmatpush1.msra.mxu0 0.0
    %994 = vmatprep.subr.mxu0 0.0
    %995 = vmatpush1.msra.mxu0 0.0
    %996 = vmatprep.subr.mxu0 0.0
    %997 = vmatpush1.msra.mxu0 0.0
    %998 = vmatprep.subr.mxu0 0.0
    %999 = vmatpush1.msra.mxu0 0.0
    %1000 = vmatprep.subr.mxu0 0.0
    %1001 = vmatpush1.msra.mxu0 0.0
    %1002 = vmatprep.subr.mxu0 0.0
    %1003 = vmatpush1.msra.mxu0 0.0
    %1004 = vmatprep.subr.mxu0 0.0
    %1005 = vmatpush1.msra.mxu0 0.0
    %1006 = vmatprep.subr.mxu0 0.0
    %1007 = vmatpush1.msra.mxu0 0.0
    %1008 = vmatprep.subr.mxu0 0.0
    %1009 = vmatpush1.msra.mxu0 0.0
    %1010 = vmatprep.subr.mxu0 0.0
    %1011 = vmatpush1.msra.mxu0 0.0
    %1012 = vmatprep.subr.mxu0 0.0
    %1013 = vmatpush1.msra.mxu0 0.0
    %1014 = vmatprep.subr.mxu0 0.0
    %1015 = vmatpush1.msra.mxu0 0.0
    %1016 = vmatprep.subr.mxu0 0.0
    %1017 = vmatpush1.msra.mxu0 0.0
    %1018 = vmatprep.mubr.f32.mxu0 0.0
    %1019 = vmatmul.mubr.f32.gmra.mrb[0].mxu0 %v952
    %v1020 = vpop.f32.mrb[0].mxu0
    %v1021 = vadd.f32 0.0, %v1020
    %v1022 = vpop.f32.mrb[0].mxu0
    %1023 = vdwg.mxu0
    %1024 = vrot.lane.b32.xlu0 %v164, 64
    %v1025 = vpop.permute.xlu0 %1024
    %v1028 = vsel %vm177, %v866, 0
    %1030 = vmatprep.subr.mxu0 0.0
    %1031 = vmatpush1.msra.mxu0 %v1025
    %1032 = vmatprep.subr.mxu0 0.0
    %1033 = vmatpush1.msra.mxu0 0.0
    %1034 = vmatprep.subr.mxu0 0.0
    %1035 = vmatpush1.msra.mxu0 0.0
    %1036 = vmatprep.subr.mxu0 0.0
    %1037 = vmatpush1.msra.mxu0 0.0
    %1038 = vmatprep.subr.mxu0 0.0
    %1039 = vmatpush1.msra.mxu0 0.0
    %1040 = vmatprep.subr.mxu0 0.0
    %1041 = vmatpush1.msra.mxu0 0.0
    %1042 = vmatprep.subr.mxu0 0.0
    %1043 = vmatpush1.msra.mxu0 0.0
    %1044 = vmatprep.subr.mxu0 0.0
    %1045 = vmatpush1.msra.mxu0 0.0
    %1046 = vmatprep.subr.mxu0 0.0
    %1047 = vmatpush1.msra.mxu0 0.0
    %1048 = vmatprep.subr.mxu0 0.0
    %1049 = vmatpush1.msra.mxu0 0.0
    %1050 = vmatprep.subr.mxu0 0.0
    %1051 = vmatpush1.msra.mxu0 0.0
    %1052 = vmatprep.subr.mxu0 0.0
    %1053 = vmatpush1.msra.mxu0 0.0
    %1054 = vmatprep.subr.mxu0 0.0
    %1055 = vmatpush1.msra.mxu0 0.0
    %1056 = vmatprep.subr.mxu0 0.0
    %1057 = vmatpush1.msra.mxu0 0.0
    %1058 = vmatprep.subr.mxu0 0.0
    %1059 = vmatpush1.msra.mxu0 0.0
    %1060 = vmatprep.subr.mxu0 0.0
    %1061 = vmatpush1.msra.mxu0 0.0
    %1062 = vmatprep.subr.mxu0 0.0
    %1063 = vmatpush1.msra.mxu0 0.0
    %1064 = vmatprep.subr.mxu0 0.0
    %1065 = vmatpush1.msra.mxu0 0.0
    %1066 = vmatprep.subr.mxu0 0.0
    %1067 = vmatpush1.msra.mxu0 0.0
    %1068 = vmatprep.subr.mxu0 0.0
    %1069 = vmatpush1.msra.mxu0 0.0
    %1070 = vmatprep.subr.mxu0 0.0
    %1071 = vmatpush1.msra.mxu0 0.0
    %1072 = vmatprep.subr.mxu0 0.0
    %1073 = vmatpush1.msra.mxu0 0.0
    %1074 = vmatprep.subr.mxu0 0.0
    %1075 = vmatpush1.msra.mxu0 0.0
    %1076 = vmatprep.subr.mxu0 0.0
    %1077 = vmatpush1.msra.mxu0 0.0
    %1078 = vmatprep.subr.mxu0 0.0
    %1079 = vmatpush1.msra.mxu0 0.0
    %1080 = vmatprep.subr.mxu0 0.0
    %1081 = vmatpush1.msra.mxu0 0.0
    %1082 = vmatprep.subr.mxu0 0.0
    %1083 = vmatpush1.msra.mxu0 0.0
    %1084 = vmatprep.subr.mxu0 0.0
    %1085 = vmatpush1.msra.mxu0 0.0
    %1086 = vmatprep.subr.mxu0 0.0
    %1087 = vmatpush1.msra.mxu0 0.0
    %1088 = vmatprep.subr.mxu0 0.0
    %1089 = vmatpush1.msra.mxu0 0.0
    %1090 = vmatprep.subr.mxu0 0.0
    %1091 = vmatpush1.msra.mxu0 0.0
    %1092 = vmatprep.subr.mxu0 0.0
    %1093 = vmatpush1.msra.mxu0 0.0
    %1094 = vmatprep.mubr.f32.mxu0 0.0
    %1095 = vmatmul.mubr.f32.gmra.mrb[0].mxu0 %v1028
    %v1096 = vpop.f32.mrb[0].mxu0
    %v1097 = vadd.f32 0.0, %v1096
    %v1098 = vpop.f32.mrb[0].mxu0
    %1099 = vdwg.mxu0
    %1100 = vrot.lane.b32.xlu0 %v166, 64
    %v1101 = vpop.permute.xlu0 %1100
    %v1104 = vsel %vm177, %v867, 0
    %1106 = vmatprep.subr.mxu0 0.0
    %1107 = vmatpush1.msra.mxu0 %v1101
    %1108 = vmatprep.subr.mxu0 0.0
    %1109 = vmatpush1.msra.mxu0 0.0
    %1110 = vmatprep.subr.mxu0 0.0
    %1111 = vmatpush1.msra.mxu0 0.0
    %1112 = vmatprep.subr.mxu0 0.0
    %1113 = vmatpush1.msra.mxu0 0.0
    %1114 = vmatprep.subr.mxu0 0.0
    %1115 = vmatpush1.msra.mxu0 0.0
    %1116 = vmatprep.subr.mxu0 0.0
    %1117 = vmatpush1.msra.mxu0 0.0
    %1118 = vmatprep.subr.mxu0 0.0
    %1119 = vmatpush1.msra.mxu0 0.0
    %1120 = vmatprep.subr.mxu0 0.0
    %1121 = vmatpush1.msra.mxu0 0.0
    %1122 = vmatprep.subr.mxu0 0.0
    %1123 = vmatpush1.msra.mxu0 0.0
    %1124 = vmatprep.subr.mxu0 0.0
    %1125 = vmatpush1.msra.mxu0 0.0
    %1126 = vmatprep.subr.mxu0 0.0
    %1127 = vmatpush1.msra.mxu0 0.0
    %1128 = vmatprep.subr.mxu0 0.0
    %1129 = vmatpush1.msra.mxu0 0.0
    %1130 = vmatprep.subr.mxu0 0.0
    %1131 = vmatpush1.msra.mxu0 0.0
    %1132 = vmatprep.subr.mxu0 0.0
    %1133 = vmatpush1.msra.mxu0 0.0
    %1134 = vmatprep.subr.mxu0 0.0
    %1135 = vmatpush1.msra.mxu0 0.0
    %1136 = vmatprep.subr.mxu0 0.0
    %1137 = vmatpush1.msra.mxu0 0.0
    %1138 = vmatprep.subr.mxu0 0.0
    %1139 = vmatpush1.msra.mxu0 0.0
    %1140 = vmatprep.subr.mxu0 0.0
    %1141 = vmatpush1.msra.mxu0 0.0
    %1142 = vmatprep.subr.mxu0 0.0
    %1143 = vmatpush1.msra.mxu0 0.0
    %1144 = vmatprep.subr.mxu0 0.0
    %1145 = vmatpush1.msra.mxu0 0.0
    %1146 = vmatprep.subr.mxu0 0.0
    %1147 = vmatpush1.msra.mxu0 0.0
    %1148 = vmatprep.subr.mxu0 0.0
    %1149 = vmatpush1.msra.mxu0 0.0
    %1150 = vmatprep.subr.mxu0 0.0
    %1151 = vmatpush1.msra.mxu0 0.0
    %1152 = vmatprep.subr.mxu0 0.0
    %1153 = vmatpush1.msra.mxu0 0.0
    %1154 = vmatprep.subr.mxu0 0.0
    %1155 = vmatpush1.msra.mxu0 0.0
    %1156 = vmatprep.subr.mxu0 0.0
    %1157 = vmatpush1.msra.mxu0 0.0
    %1158 = vmatprep.subr.mxu0 0.0
    %1159 = vmatpush1.msra.mxu0 0.0
    %1160 = vmatprep.subr.mxu0 0.0
    %1161 = vmatpush1.msra.mxu0 0.0
    %1162 = vmatprep.subr.mxu0 0.0
    %1163 = vmatpush1.msra.mxu0 0.0
    %1164 = vmatprep.subr.mxu0 0.0
    %1165 = vmatpush1.msra.mxu0 0.0
    %1166 = vmatprep.subr.mxu0 0.0
    %1167 = vmatpush1.msra.mxu0 0.0
    %1168 = vmatprep.subr.mxu0 0.0
    %1169 = vmatpush1.msra.mxu0 0.0
    %1170 = vmatprep.mubr.f32.mxu0 0.0
    %1171 = vmatmul.mubr.f32.gmra.mrb[0].mxu0 %v1104
    %v1172 = vpop.f32.mrb[0].mxu0
    %v1173 = vadd.f32 0.0, %v1172
    %v1174 = vpop.f32.mrb[0].mxu0
    %1175 = vdwg.mxu0
    %1176 = vrot.lane.b32.xlu0 %v157, 64
    %v1177 = vpop.permute.xlu0 %1176
    %v1180 = vsel %vm177, %v868, 0
    %1182 = vmatprep.subr.mxu0 0.0
    %1183 = vmatpush1.msra.mxu0 %v1177
    %1184 = vmatprep.subr.mxu0 0.0
    %1185 = vmatpush1.msra.mxu0 0.0
    %1186 = vmatprep.subr.mxu0 0.0
    %1187 = vmatpush1.msra.mxu0 0.0
    %1188 = vmatprep.subr.mxu0 0.0
    %1189 = vmatpush1.msra.mxu0 0.0
    %1190 = vmatprep.subr.mxu0 0.0
    %1191 = vmatpush1.msra.mxu0 0.0
    %1192 = vmatprep.subr.mxu0 0.0
    %1193 = vmatpush1.msra.mxu0 0.0
    %1194 = vmatprep.subr.mxu0 0.0
    %1195 = vmatpush1.msra.mxu0 0.0
    %1196 = vmatprep.subr.mxu0 0.0
    %1197 = vmatpush1.msra.mxu0 0.0
    %1198 = vmatprep.subr.mxu0 0.0
    %1199 = vmatpush1.msra.mxu0 0.0
    %1200 = vmatprep.subr.mxu0 0.0
    %1201 = vmatpush1.msra.mxu0 0.0
    %1202 = vmatprep.subr.mxu0 0.0
    %1203 = vmatpush1.msra.mxu0 0.0
    %1204 = vmatprep.subr.mxu0 0.0
    %1205 = vmatpush1.msra.mxu0 0.0
    %1206 = vmatprep.subr.mxu0 0.0
    %1207 = vmatpush1.msra.mxu0 0.0
    %1208 = vmatprep.subr.mxu0 0.0
    %1209 = vmatpush1.msra.mxu0 0.0
    %1210 = vmatprep.subr.mxu0 0.0
    %1211 = vmatpush1.msra.mxu0 0.0
    %1212 = vmatprep.subr.mxu0 0.0
    %1213 = vmatpush1.msra.mxu0 0.0
    %1214 = vmatprep.subr.mxu0 0.0
    %1215 = vmatpush1.msra.mxu0 0.0
    %1216 = vmatprep.subr.mxu0 0.0
    %1217 = vmatpush1.msra.mxu0 0.0
    %1218 = vmatprep.subr.mxu0 0.0
    %1219 = vmatpush1.msra.mxu0 0.0
    %1220 = vmatprep.subr.mxu0 0.0
    %1221 = vmatpush1.msra.mxu0 0.0
    %1222 = vmatprep.subr.mxu0 0.0
    %1223 = vmatpush1.msra.mxu0 0.0
    %1224 = vmatprep.subr.mxu0 0.0
    %1225 = vmatpush1.msra.mxu0 0.0
    %1226 = vmatprep.subr.mxu0 0.0
    %1227 = vmatpush1.msra.mxu0 0.0
    %1228 = vmatprep.subr.mxu0 0.0
    %1229 = vmatpush1.msra.mxu0 0.0
    %1230 = vmatprep.subr.mxu0 0.0
    %1231 = vmatpush1.msra.mxu0 0.0
    %1232 = vmatprep.subr.mxu0 0.0
    %1233 = vmatpush1.msra.mxu0 0.0
    %1234 = vmatprep.subr.mxu0 0.0
    %1235 = vmatpush1.msra.mxu0 0.0
    %1236 = vmatprep.subr.mxu0 0.0
    %1237 = vmatpush1.msra.mxu0 0.0
    %1238 = vmatprep.subr.mxu0 0.0
    %1239 = vmatpush1.msra.mxu0 0.0
    %1240 = vmatprep.subr.mxu0 0.0
    %1241 = vmatpush1.msra.mxu0 0.0
    %1242 = vmatprep.subr.mxu0 0.0
    %1243 = vmatpush1.msra.mxu0 0.0
    %1244 = vmatprep.subr.mxu0 0.0
    %1245 = vmatpush1.msra.mxu0 0.0
    %1246 = vmatprep.mubr.f32.mxu0 0.0
    %1247 = vmatmul.mubr.f32.gmra.mrb[0].mxu0 %v1180
    %v1248 = vpop.f32.mrb[0].mxu0
    %v1249 = vadd.f32 0.0, %v1248
    %v1250 = vpop.f32.mrb[0].mxu0
    %1251 = vdwg.mxu0
    %1252 = vrot.lane.b32.xlu0 %v169, 64
    %v1253 = vpop.permute.xlu0 %1252
    %v1256 = vsel %vm177, %v869, 0
    %1258 = vmatprep.subr.mxu0 0.0
    %1259 = vmatpush1.msra.mxu0 %v1253
    %1260 = vmatprep.subr.mxu0 0.0
    %1261 = vmatpush1.msra.mxu0 0.0
    %1262 = vmatprep.subr.mxu0 0.0
    %1263 = vmatpush1.msra.mxu0 0.0
    %1264 = vmatprep.subr.mxu0 0.0
    %1265 = vmatpush1.msra.mxu0 0.0
    %1266 = vmatprep.subr.mxu0 0.0
    %1267 = vmatpush1.msra.mxu0 0.0
    %1268 = vmatprep.subr.mxu0 0.0
    %1269 = vmatpush1.msra.mxu0 0.0
    %1270 = vmatprep.subr.mxu0 0.0
    %1271 = vmatpush1.msra.mxu0 0.0
    %1272 = vmatprep.subr.mxu0 0.0
    %1273 = vmatpush1.msra.mxu0 0.0
    %1274 = vmatprep.subr.mxu0 0.0
    %1275 = vmatpush1.msra.mxu0 0.0
    %1276 = vmatprep.subr.mxu0 0.0
    %1277 = vmatpush1.msra.mxu0 0.0
    %1278 = vmatprep.subr.mxu0 0.0
    %1279 = vmatpush1.msra.mxu0 0.0
    %1280 = vmatprep.subr.mxu0 0.0
    %1281 = vmatpush1.msra.mxu0 0.0
    %1282 = vmatprep.subr.mxu0 0.0
    %1283 = vmatpush1.msra.mxu0 0.0
    %1284 = vmatprep.subr.mxu0 0.0
    %1285 = vmatpush1.msra.mxu0 0.0
    %1286 = vmatprep.subr.mxu0 0.0
    %1287 = vmatpush1.msra.mxu0 0.0
    %1288 = vmatprep.subr.mxu0 0.0
    %1289 = vmatpush1.msra.mxu0 0.0
    %1290 = vmatprep.subr.mxu0 0.0
    %1291 = vmatpush1.msra.mxu0 0.0
    %1292 = vmatprep.subr.mxu0 0.0
    %1293 = vmatpush1.msra.mxu0 0.0
    %1294 = vmatprep.subr.mxu0 0.0
    %1295 = vmatpush1.msra.mxu0 0.0
    %1296 = vmatprep.subr.mxu0 0.0
    %1297 = vmatpush1.msra.mxu0 0.0
    %1298 = vmatprep.subr.mxu0 0.0
    %1299 = vmatpush1.msra.mxu0 0.0
    %1300 = vmatprep.subr.mxu0 0.0
    %1301 = vmatpush1.msra.mxu0 0.0
    %1302 = vmatprep.subr.mxu0 0.0
    %1303 = vmatpush1.msra.mxu0 0.0
    %1304 = vmatprep.subr.mxu0 0.0
    %1305 = vmatpush1.msra.mxu0 0.0
    %1306 = vmatprep.subr.mxu0 0.0
    %1307 = vmatpush1.msra.mxu0 0.0
    %1308 = vmatprep.subr.mxu0 0.0
    %1309 = vmatpush1.msra.mxu0 0.0
    %1310 = vmatprep.subr.mxu0 0.0
    %1311 = vmatpush1.msra.mxu0 0.0
    %1312 = vmatprep.subr.mxu0 0.0
    %1313 = vmatpush1.msra.mxu0 0.0
    %1314 = vmatprep.subr.mxu0 0.0
    %1315 = vmatpush1.msra.mxu0 0.0
    %1316 = vmatprep.subr.mxu0 0.0
    %1317 = vmatpush1.msra.mxu0 0.0
    %1318 = vmatprep.subr.mxu0 0.0
    %1319 = vmatpush1.msra.mxu0 0.0
    %1320 = vmatprep.subr.mxu0 0.0
    %1321 = vmatpush1.msra.mxu0 0.0
    %1322 = vmatprep.mubr.f32.mxu0 0.0
    %1323 = vmatmul.mubr.f32.gmra.mrb[0].mxu0 %v1256
    %v1324 = vpop.f32.mrb[0].mxu0
    %v1325 = vadd.f32 0.0, %v1324
    %v1326 = vpop.f32.mrb[0].mxu0
    %1327 = vdwg.mxu0
    %1328 = vrot.lane.b32.xlu0 %v171, 64
    %v1329 = vpop.permute.xlu0 %1328
    %v1332 = vsel %vm177, %v870, 0
    %1334 = vmatprep.subr.mxu0 0.0
    %1335 = vmatpush1.msra.mxu0 %v1329
    %1336 = vmatprep.subr.mxu0 0.0
    %1337 = vmatpush1.msra.mxu0 0.0
    %1338 = vmatprep.subr.mxu0 0.0
    %1339 = vmatpush1.msra.mxu0 0.0
    %1340 = vmatprep.subr.mxu0 0.0
    %1341 = vmatpush1.msra.mxu0 0.0
    %1342 = vmatprep.subr.mxu0 0.0
    %1343 = vmatpush1.msra.mxu0 0.0
    %1344 = vmatprep.subr.mxu0 0.0
    %1345 = vmatpush1.msra.mxu0 0.0
    %1346 = vmatprep.subr.mxu0 0.0
    %1347 = vmatpush1.msra.mxu0 0.0
    %1348 = vmatprep.subr.mxu0 0.0
    %1349 = vmatpush1.msra.mxu0 0.0
    %1350 = vmatprep.subr.mxu0 0.0
    %1351 = vmatpush1.msra.mxu0 0.0
    %1352 = vmatprep.subr.mxu0 0.0
    %1353 = vmatpush1.msra.mxu0 0.0
    %1354 = vmatprep.subr.mxu0 0.0
    %1355 = vmatpush1.msra.mxu0 0.0
    %1356 = vmatprep.subr.mxu0 0.0
    %1357 = vmatpush1.msra.mxu0 0.0
    %1358 = vmatprep.subr.mxu0 0.0
    %1359 = vmatpush1.msra.mxu0 0.0
    %1360 = vmatprep.subr.mxu0 0.0
    %1361 = vmatpush1.msra.mxu0 0.0
    %1362 = vmatprep.subr.mxu0 0.0
    %1363 = vmatpush1.msra.mxu0 0.0
    %1364 = vmatprep.subr.mxu0 0.0
    %1365 = vmatpush1.msra.mxu0 0.0
    %1366 = vmatprep.subr.mxu0 0.0
    %1367 = vmatpush1.msra.mxu0 0.0
    %1368 = vmatprep.subr.mxu0 0.0
    %1369 = vmatpush1.msra.mxu0 0.0
    %1370 = vmatprep.subr.mxu0 0.0
    %1371 = vmatpush1.msra.mxu0 0.0
    %1372 = vmatprep.subr.mxu0 0.0
    %1373 = vmatpush1.msra.mxu0 0.0
    %1374 = vmatprep.subr.mxu0 0.0
    %1375 = vmatpush1.msra.mxu0 0.0
    %1376 = vmatprep.subr.mxu0 0.0
    %1377 = vmatpush1.msra.mxu0 0.0
    %1378 = vmatprep.subr.mxu0 0.0
    %1379 = vmatpush1.msra.mxu0 0.0
    %1380 = vmatprep.subr.mxu0 0.0
    %1381 = vmatpush1.msra.mxu0 0.0
    %1382 = vmatprep.subr.mxu0 0.0
    %1383 = vmatpush1.msra.mxu0 0.0
    %1384 = vmatprep.subr.mxu0 0.0
    %1385 = vmatpush1.msra.mxu0 0.0
    %1386 = vmatprep.subr.mxu0 0.0
    %1387 = vmatpush1.msra.mxu0 0.0
    %1388 = vmatprep.subr.mxu0 0.0
    %1389 = vmatpush1.msra.mxu0 0.0
    %1390 = vmatprep.subr.mxu0 0.0
    %1391 = vmatpush1.msra.mxu0 0.0
    %1392 = vmatprep.subr.mxu0 0.0
    %1393 = vmatpush1.msra.mxu0 0.0
    %1394 = vmatprep.subr.mxu0 0.0
    %1395 = vmatpush1.msra.mxu0 0.0
    %1396 = vmatprep.subr.mxu0 0.0
    %1397 = vmatpush1.msra.mxu0 0.0
    %1398 = vmatprep.mubr.f32.mxu0 0.0
    %1399 = vmatmul.mubr.f32.gmra.mrb[0].mxu0 %v1332
    %v1400 = vpop.f32.mrb[0].mxu0
    %v1401 = vadd.f32 0.0, %v1400
    %v1402 = vpop.f32.mrb[0].mxu0
    %1403 = vdwg.mxu0
    %1404 = vrot.lane.b32.xlu0 %v173, 64
    %v1405 = vpop.permute.xlu0 %1404
    %v1408 = vsel %vm177, %v871, 0
    %1410 = vmatprep.subr.mxu0 0.0
    %1411 = vmatpush1.msra.mxu0 %v1405
    %1412 = vmatprep.subr.mxu0 0.0
    %1413 = vmatpush1.msra.mxu0 0.0
    %1414 = vmatprep.subr.mxu0 0.0
    %1415 = vmatpush1.msra.mxu0 0.0
    %1416 = vmatprep.subr.mxu0 0.0
    %1417 = vmatpush1.msra.mxu0 0.0
    %1418 = vmatprep.subr.mxu0 0.0
    %1419 = vmatpush1.msra.mxu0 0.0
    %1420 = vmatprep.subr.mxu0 0.0
    %1421 = vmatpush1.msra.mxu0 0.0
    %1422 = vmatprep.subr.mxu0 0.0
    %1423 = vmatpush1.msra.mxu0 0.0
    %1424 = vmatprep.subr.mxu0 0.0
    %1425 = vmatpush1.msra.mxu0 0.0
    %1426 = vmatprep.subr.mxu0 0.0
    %1427 = vmatpush1.msra.mxu0 0.0
    %1428 = vmatprep.subr.mxu0 0.0
    %1429 = vmatpush1.msra.mxu0 0.0
    %1430 = vmatprep.subr.mxu0 0.0
    %1431 = vmatpush1.msra.mxu0 0.0
    %1432 = vmatprep.subr.mxu0 0.0
    %1433 = vmatpush1.msra.mxu0 0.0
    %1434 = vmatprep.subr.mxu0 0.0
    %1435 = vmatpush1.msra.mxu0 0.0
    %1436 = vmatprep.subr.mxu0 0.0
    %1437 = vmatpush1.msra.mxu0 0.0
    %1438 = vmatprep.subr.mxu0 0.0
    %1439 = vmatpush1.msra.mxu0 0.0
    %1440 = vmatprep.subr.mxu0 0.0
    %1441 = vmatpush1.msra.mxu0 0.0
    %1442 = vmatprep.subr.mxu0 0.0
    %1443 = vmatpush1.msra.mxu0 0.0
    %1444 = vmatprep.subr.mxu0 0.0
    %1445 = vmatpush1.msra.mxu0 0.0
    %1446 = vmatprep.subr.mxu0 0.0
    %1447 = vmatpush1.msra.mxu0 0.0
    %1448 = vmatprep.subr.mxu0 0.0
    %1449 = vmatpush1.msra.mxu0 0.0
    %1450 = vmatprep.subr.mxu0 0.0
    %1451 = vmatpush1.msra.mxu0 0.0
    %1452 = vmatprep.subr.mxu0 0.0
    %1453 = vmatpush1.msra.mxu0 0.0
    %1454 = vmatprep.subr.mxu0 0.0
    %1455 = vmatpush1.msra.mxu0 0.0
    %1456 = vmatprep.subr.mxu0 0.0
    %1457 = vmatpush1.msra.mxu0 0.0
    %1458 = vmatprep.subr.mxu0 0.0
    %1459 = vmatpush1.msra.mxu0 0.0
    %1460 = vmatprep.subr.mxu0 0.0
    %1461 = vmatpush1.msra.mxu0 0.0
    %1462 = vmatprep.subr.mxu0 0.0
    %1463 = vmatpush1.msra.mxu0 0.0
    %1464 = vmatprep.subr.mxu0 0.0
    %1465 = vmatpush1.msra.mxu0 0.0
    %1466 = vmatprep.subr.mxu0 0.0
    %1467 = vmatpush1.msra.mxu0 0.0
    %1468 = vmatprep.subr.mxu0 0.0
    %1469 = vmatpush1.msra.mxu0 0.0
    %1470 = vmatprep.subr.mxu0 0.0
    %1471 = vmatpush1.msra.mxu0 0.0
    %1472 = vmatprep.subr.mxu0 0.0
    %1473 = vmatpush1.msra.mxu0 0.0
    %1474 = vmatprep.mubr.f32.mxu0 0.0
    %1475 = vmatmul.mubr.f32.gmra.mrb[0].mxu0 %v1408
    %v1476 = vpop.f32.mrb[0].mxu0
    %v1477 = vadd.f32 0.0, %v1476
    %v1478 = vpop.f32.mrb[0].mxu0
    %1479 = vdwg.mxu0
    %1481 = vrot.lane.b32.xlu0 %v1021, 8
    %v1482 = vpop.permute.xlu0 %1481
    %1485 = vrot.lane.b32.xlu0 %v1097, 16
    %v1486 = vpop.permute.xlu0 %1485
    %1489 = vrot.lane.b32.xlu0 %v1173, 24
    %v1490 = vpop.permute.xlu0 %1489
    %v1492 = vsel %vm177, %v945, %v1482
    %vm1493 = vcmask 130048
    %v1494 = vsel %vm1493, %v1492, %v1486
    %vm1495 = vcmask 195584
    %v1496 = vsel %vm1495, %v1494, %v1490
    %1498 = vrot.lane.b32.xlu0 %v1325, 8
    %v1499 = vpop.permute.xlu0 %1498
    %1502 = vrot.lane.b32.xlu0 %v1401, 16
    %v1503 = vpop.permute.xlu0 %1502
    %1506 = vrot.lane.b32.xlu0 %v1477, 24
    %v1507 = vpop.permute.xlu0 %1506
    %v1509 = vsel %vm177, %v1249, %v1499
    %v1510 = vsel %vm1493, %v1509, %v1503
    %v1511 = vsel %vm1495, %v1510, %v1507
    %v1512 = vld [vmem:[#allocation7] sm:$0xff]
    %v1513 = vld [vmem:[#allocation7 + $0x8] sm:$0xff]
    %v1514 = vld [vmem:[#allocation7 + $0x10] sm:$0xff]
    %v1515 = vld [vmem:[#allocation7 + $0x18] sm:$0xff]
    %v1516 = vld [vmem:[%s5] sm:$0x1]
    %v1518 = vlaneseq
    %v1519 = vshrl.u32 %v1518, 7
    %v1520 = vsub.s32 0, %v1519
    %v1521 = vrot.slane %v1516, %v1520
    %v1524 = vsel %vm78, %v1496, 0
    %v1527 = vsel %vm78, %v1511, 0
    %1529 = vmatprep.subr.mxu0 0.0
    %1530 = vmatpush1.msra.mxu0 %v1512
    %1531 = vmatprep.subr.mxu0 0.0
    %1532 = vmatpush1.msra.mxu0 %v1513
    %1533 = vmatprep.subr.mxu0 0.0
    %1534 = vmatpush1.msra.mxu0 %v1514
    %1535 = vmatprep.subr.mxu0 0.0
    %1536 = vmatpush1.msra.mxu0 %v1515
    %1537 = vmatprep.subr.mxu0 0.0
    %1538 = vmatpush1.msra.mxu0 0.0
    %1539 = vmatprep.subr.mxu0 0.0
    %1540 = vmatpush1.msra.mxu0 0.0
    %1541 = vmatprep.subr.mxu0 0.0
    %1542 = vmatpush1.msra.mxu0 0.0
    %1543 = vmatprep.subr.mxu0 0.0
    %1544 = vmatpush1.msra.mxu0 0.0
    %1545 = vmatprep.subr.mxu0 0.0
    %1546 = vmatpush1.msra.mxu0 0.0
    %1547 = vmatprep.subr.mxu0 0.0
    %1548 = vmatpush1.msra.mxu0 0.0
    %1549 = vmatprep.subr.mxu0 0.0
    %1550 = vmatpush1.msra.mxu0 0.0
    %1551 = vmatprep.subr.mxu0 0.0
    %1552 = vmatpush1.msra.mxu0 0.0
    %1553 = vmatprep.subr.mxu0 0.0
    %1554 = vmatpush1.msra.mxu0 0.0
    %1555 = vmatprep.subr.mxu0 0.0
    %1556 = vmatpush1.msra.mxu0 0.0
    %1557 = vmatprep.subr.mxu0 0.0
    %1558 = vmatpush1.msra.mxu0 0.0
    %1559 = vmatprep.subr.mxu0 0.0
    %1560 = vmatpush1.msra.mxu0 0.0
    %1561 = vmatprep.subr.mxu0 0.0
    %1562 = vmatpush1.msra.mxu0 0.0
    %1563 = vmatprep.subr.mxu0 0.0
    %1564 = vmatpush1.msra.mxu0 0.0
    %1565 = vmatprep.subr.mxu0 0.0
    %1566 = vmatpush1.msra.mxu0 0.0
    %1567 = vmatprep.subr.mxu0 0.0
    %1568 = vmatpush1.msra.mxu0 0.0
    %1569 = vmatprep.subr.mxu0 0.0
    %1570 = vmatpush1.msra.mxu0 0.0
    %1571 = vmatprep.subr.mxu0 0.0
    %1572 = vmatpush1.msra.mxu0 0.0
    %1573 = vmatprep.subr.mxu0 0.0
    %1574 = vmatpush1.msra.mxu0 0.0
    %1575 = vmatprep.subr.mxu0 0.0
    %1576 = vmatpush1.msra.mxu0 0.0
    %1577 = vmatprep.subr.mxu0 0.0
    %1578 = vmatpush1.msra.mxu0 0.0
    %1579 = vmatprep.subr.mxu0 0.0
    %1580 = vmatpush1.msra.mxu0 0.0
    %1581 = vmatprep.subr.mxu0 0.0
    %1582 = vmatpush1.msra.mxu0 0.0
    %1583 = vmatprep.subr.mxu0 0.0
    %1584 = vmatpush1.msra.mxu0 0.0
    %1585 = vmatprep.subr.mxu0 0.0
    %1586 = vmatpush1.msra.mxu0 0.0
    %1587 = vmatprep.subr.mxu0 0.0
    %1588 = vmatpush1.msra.mxu0 0.0
    %1589 = vmatprep.subr.mxu0 0.0
    %1590 = vmatpush1.msra.mxu0 0.0
    %1591 = vmatprep.subr.mxu0 0.0
    %1592 = vmatpush1.msra.mxu0 0.0
    %1593 = vmatprep.mubr.f32.mxu0 0.0
    %1594 = vmatmul.mubr.f32.gmra.mrb[0].mxu0 %v1524
    %v1595 = vpop.f32.mrb[0].mxu0
    %v1596 = vadd.f32 %v1521, %v1595
    %v1597 = vpop.f32.mrb[0].mxu0
    %1598 = vmatprep.mubr.f32.mxu0 0.0
    %1599 = vmatmul.mubr.f32.gmra.mrb[0].mxu0 %v1527
    %v1600 = vpop.f32.mrb[0].mxu0
    %v1601 = vadd.f32 %v1521, %v1600
    %v1602 = vpop.f32.mrb[0].mxu0
    %1603 = vdwg.mxu0
    %1604 = vst.msk [vmem:[#allocation8] sm:$0xff] %vm78, %v1596
    %1605 = vst.msk [vmem:[#allocation8 + $0x8] sm:$0xff] %vm78, %v1601
    // Predicated region
    $region38: #{tpu_custom_call.1} parent=1 // pred_check
      _
    $region39: #{tpu_custom_call.1} parent=1 // pred_check_branch
      %1607 = sbr.rel (0) target = $region41
    $region40: #{tpu_custom_call.1} parent=1 // pred_region
      %s1609 = ssub.s32 256, 256
      %1610 = vsyncadd [#allocation4], %s1609
      %s1611 = sshll.u32 [#allocation8], 4
      %s1612 = int_to_ptr.vmem [resolvable:$true] %s1611
      %1617 = dma.vmem_to_hbm [thread:$0]  %s1612, 256, %s6, [#allocation4], 128, 128, 8
    $region41: #{tpu_custom_call.1} parent=1 // pred_fallthru
      _
    // Predicated region
    $region42: #{tpu_custom_call.1} parent=1 // pred_check
      _
    $region43: #{tpu_custom_call.1} parent=1 // pred_check_branch
      %1619 = sbr.rel (0) target = $region45
    $region44: #{tpu_custom_call.1} parent=1 // pred_region
      %1620 = dma.done [#allocation4], 256
    $region45: #{tpu_custom_call.1} parent=1 // pred_fallthru
      _
    %1621 = vsyncpa [#allocation3], 1
    %1622 = vsyncpa [#allocation6], 1
    %1623 = vsyncpa [#allocation4], 1

</llo_original>
